<compile_context>
chip_gen: v7x
topology: tpu7x:2x2x1
jax: 0.10.0
libtpu: 0.0.40
codegen_flags: <defaults>
</compile_context>

<pallas_src>
import functools

import jax
import jax.numpy as jnp
from jax.experimental import pallas as pl
from jax.experimental.pallas import tpu as pltpu


_SUBLANE = 8     # f32 sublane width
_LANE = 128      # lane width


def _round_up(x, m):
    return (x + m - 1) // m * m


def _uncond_decoder_kernel(ids_ref, emb_ref, wx_ref, wh_ref, b_ref, wo_ref,
                           dec_ref, *, n_steps, batch_pad, vocab):
    """Whole decoder forward (embedding -> RNN -> output proj) in one call.

    ids_ref : (T*Bp, 1)  int32 target token ids, time-major (row = t*Bp + b);
                         padded batch rows hold id 0 (never read out)
    emb_ref : (V, Ep)    embedding table, E zero-padded to lane width
    wx_ref  : (Ep, Hp)   input -> hidden
    wh_ref  : (Hp, Hp)   hidden -> hidden (the only serial dependency)
    b_ref   : (1, Hp)    bias
    wo_ref  : (Hp, Hp)   output projection (hidden part; context part is 0)
    dec_ref : (T*Bp, Hp) decoder output rows
    """
    tb = ids_ref.shape[0]
    ep = emb_ref.shape[1]
    hp = wh_ref.shape[1]

    # --- Fused embedding lookup (exact; no gather, no MXU rounding).
    # Unrolled select-accumulate over the tiny vocabulary, hoisted out of the
    # serial recurrence.  Exactly one term per row is non-zero.
    ids = ids_ref[...]                                       # (TB, 1) int32
    emb = emb_ref[...]                                       # (V, Ep)
    ids_b = jnp.broadcast_to(ids, (tb, ep))                  # hoisted lane bcast
    x = jnp.zeros((tb, ep), jnp.float32)
    for v in range(vocab):
        row = jnp.broadcast_to(emb[v:v + 1, :], (tb, ep))    # sublane bcast
        x = x + jnp.where(ids_b == v, row, 0.0)

    # --- Hoisted input projection: one batched MXU matmul for all steps.
    pre_x = (jnp.dot(x, wx_ref[...], preferred_element_type=jnp.float32)
             + b_ref[...])                                   # (TB, Hp)

    # --- Serial recurrence: fully unrolled, static sublane-aligned slices,
    # per-step h tiles stay live in vregs.
    # TODO(synk): on v5e/v6e, keep wh resident in MXU weight registers across
    # the steps via pltpu.matmul_push_rhs / matmul_acc_lhs / matmul_pop.
    wh = wh_ref[...]
    h = jnp.zeros((batch_pad, hp), jnp.float32)
    hs = []
    for t in range(n_steps):
        lo = t * batch_pad
        h = jnp.tanh(pre_x[lo:lo + batch_pad, :]
                     + jnp.dot(h, wh, preferred_element_type=jnp.float32))
        hs.append(h)
    h_all = jnp.concatenate(hs, axis=0)                      # (TB, Hp)

    # --- Batched output projection; single lane-dense, unmasked store.
    dec_ref[...] = jnp.tanh(jnp.dot(h_all, wo_ref[...],
                                    preferred_element_type=jnp.float32))


def prepare_kernel_params(params):
    """One-time zero-padding of weights to TPU-friendly shapes (exact).
    Done once, outside the per-call forward path."""
    emb, wx, wh, b, wo = (params["emb"], params["wx"], params["wh"],
                          params["b"], params["wo_h"])
    vocab, e = emb.shape
    h = wh.shape[0]
    vp = _round_up(vocab, _SUBLANE)
    ep = _round_up(e, _LANE)
    hp = _round_up(h, _LANE)
    return {
        "vocab": vocab, "emb_dim": e, "hidden": h,
        "emb":  jnp.pad(emb, ((0, vp - vocab), (0, ep - e))),
        "wx":   jnp.pad(wx, ((0, ep - e), (0, hp - h))),
        "wh":   jnp.pad(wh, ((0, hp - h), (0, hp - h))),
        "b":    jnp.pad(b, ((0, 0), (0, hp - h))),
        "wo_h": jnp.pad(wo, ((0, hp - h), (0, hp - h))),
    }


def uncond_model_forward(kparams, src, tgt, lengths, bptt=False):
    """Pallas equivalent of UncondModel.forward.

    Args:
      kparams: prepared (padded) kernel params, see prepare_kernel_params
      src    : unused (only consumed by decoder.init_state in the original;
               the memory bank is zeros regardless)
      tgt    : (tgt_len, batch) int32 token ids
      lengths: (batch,) int32 src lengths (unused: memory bank src_len == 1)
      bptt   : TODO(synk): bptt=True (decoder-state carry across calls) would
               need h0 threaded in/out of the kernel; it always starts at 0.

    Returns:
      dec_out: (tgt_len-1, batch, hidden) f32
      attns  : {"std": (tgt_len-1, batch, 1)} f32 (softmax over len-1 src == 1)
    """
    del src, lengths, bptt

    tgt_in = tgt[:-1]                                  # tgt = tgt[:-1]
    T, B = tgt_in.shape
    H = kparams["hidden"]
    Hp = kparams["wh"].shape[1]
    Bp = _round_up(B, _SUBLANE)

    # Pad batch to a full sublane tile; padded rows compute harmlessly and
    # are sliced off below (every dec_ref row is written, nothing stale).
    ids = jnp.pad(tgt_in, ((0, 0), (0, Bp - B))).reshape(T * Bp, 1)

    kernel = functools.partial(_uncond_decoder_kernel, n_steps=T,
                               batch_pad=Bp, vocab=kparams["vocab"])

    dec_flat = pl.pallas_call(
        kernel,
        out_shape=jax.ShapeDtypeStruct((T * Bp, Hp), jnp.float32),
        in_specs=[pl.BlockSpec(memory_space=pltpu.MemorySpace.VMEM)] * 6,
        out_specs=pl.BlockSpec(memory_space=pltpu.MemorySpace.VMEM),
    )(ids, kparams["emb"], kparams["wx"], kparams["wh"], kparams["b"],
      kparams["wo_h"])

    dec_out = dec_flat.reshape(T, Bp, Hp)[:, :B, :H]
    # Attention over the all-zero, length-1 memory bank is identically 1.0
    # (softmax of a single score); the context is 0 so it never feeds dec_out.
    attns = {"std": jnp.ones((T, B, 1), jnp.float32)}
    return dec_out, attns


def init_params(key, vocab, emb, hidden):
    ks = jax.random.split(key, 6)
    s = 0.1
    return {
        "emb":  s * jax.random.normal(ks[0], (vocab, emb), jnp.float32),
        "wx":   s * jax.random.normal(ks[1], (emb, hidden), jnp.float32),
        "wh":   s * jax.random.normal(ks[2], (hidden, hidden), jnp.float32),
        "b":    jnp.zeros((1, hidden), jnp.float32),
        # wa / wo_c exist in the module but only ever multiply a zero context;
        # they are dead code and not passed to the kernel.
        "wa":   s * jax.random.normal(ks[3], (hidden, 1), jnp.float32),
        "wo_c": s * jax.random.normal(ks[4], (1, hidden), jnp.float32),
        "wo_h": s * jax.random.normal(ks[5], (hidden, hidden), jnp.float32),
    }


def _reference_forward(params, tgt):
    """Pure-JAX reference of the same decoder (includes the zero-context
    attention branch explicitly)."""
    tgt_in = tgt[:-1]
    T, B = tgt_in.shape
    H = params["wh"].shape[0]
    x = jnp.take(params["emb"], tgt_in, axis=0)          # (T, B, E)
    mem = jnp.zeros((B, 1), jnp.float32)                 # zero memory bank
    h = jnp.zeros((B, H), jnp.float32)
    dec, attn = [], []
    for t in range(T):
        h = jnp.tanh(x[t] @ params["wx"] + h @ params["wh"] + params["b"])
        scores = (h @ params["wa"]) * mem                # (B, 1)
        a = jnp.exp(scores - scores)                     # softmax over len-1 == 1
        ctx = a * mem                                    # == 0
        dec.append(jnp.tanh(ctx @ params["wo_c"] + h @ params["wo_h"]))
        attn.append(a)
    return jnp.stack(dec, axis=0), jnp.stack(attn, axis=0)


if __name__ == "__main__":
    key = jax.random.PRNGKey(0)
    VOCAB, EMB, HIDDEN = 16, 32, 32
    TGT_LEN, BATCH, SRC_LEN = 9, 4, 8    # decoder runs on tgt_len-1 = 8 steps

    pkey, tkey, skey = jax.random.split(key, 3)
    params = init_params(pkey, VOCAB, EMB, HIDDEN)
    kparams = prepare_kernel_params(params)

    tgt = jax.random.randint(tkey, (TGT_LEN, BATCH), 0, VOCAB, dtype=jnp.int32)
    src = jax.random.randint(skey, (SRC_LEN, BATCH, 1), 0, VOCAB, dtype=jnp.int32)
    lengths = jnp.full((BATCH,), SRC_LEN, dtype=jnp.int32)

    dec_out, attns = uncond_model_forward(kparams, src, tgt, lengths, bptt=False)
    dec_out = jax.block_until_ready(dec_out)
    attn_std = jax.block_until_ready(attns["std"])

    ref_dec, ref_attn = _reference_forward(params, tgt)

    assert dec_out.shape == (TGT_LEN - 1, BATCH, HIDDEN)
    assert attn_std.shape == (TGT_LEN - 1, BATCH, 1)
    assert bool(jnp.all(jnp.isfinite(dec_out)))
    assert bool(jnp.allclose(dec_out, ref_dec, rtol=1e-5, atol=1e-5))
    assert bool(jnp.allclose(attn_std, ref_attn, rtol=1e-6, atol=1e-6))
    print("KERNEL_OK")
</pallas_src>

<mosaic_0001>
module attributes {stable_mosaic.version = 11 : i64} {
  func.func @_uncond_decoder_kernel(%arg0: memref<64x1xi32, #tpu.memory_space<vmem>>, %arg1: memref<16x128xf32, #tpu.memory_space<vmem>>, %arg2: memref<128x128xf32, #tpu.memory_space<vmem>>, %arg3: memref<128x128xf32, #tpu.memory_space<vmem>>, %arg4: memref<1x128xf32, #tpu.memory_space<vmem>>, %arg5: memref<128x128xf32, #tpu.memory_space<vmem>>, %arg6: memref<64x128xf32, #tpu.memory_space<vmem>>) attributes {dimension_semantics = [], scalar_prefetch = 0 : i64, scratch_operands = 0 : i64, tpu.core_type = #tpu.core_type<tc>} {
    %c0 = arith.constant 0 : index
    %c0_0 = arith.constant 0 : index
    %0 = vector.load %arg0[%c0, %c0_0] : memref<64x1xi32, #tpu.memory_space<vmem>>, vector<64x1xi32>
    %c0_1 = arith.constant 0 : index
    %c0_2 = arith.constant 0 : index
    %1 = vector.load %arg1[%c0_1, %c0_2] : memref<16x128xf32, #tpu.memory_space<vmem>>, vector<16x128xf32>
    %2 = vector.shape_cast %0 : vector<64x1xi32> to vector<64x1xi32>
    %3 = vector.broadcast %2 : vector<64x1xi32> to vector<64x128xi32>
    %cst = arith.constant 0.000000e+00 : f32
    %4 = vector.broadcast %cst : f32 to vector<64x128xf32>
    %5 = vector.extract_strided_slice %1 {offsets = [0, 0], sizes = [1, 128], strides = [1, 1]} : vector<16x128xf32> to vector<1x128xf32>
    %6 = vector.shape_cast %5 : vector<1x128xf32> to vector<1x128xf32>
    %7 = vector.broadcast %6 : vector<1x128xf32> to vector<64x128xf32>
    %c0_i32 = arith.constant 0 : i32
    %8 = vector.broadcast %c0_i32 : i32 to vector<64x128xi32>
    %9 = arith.cmpi eq, %3, %8 : vector<64x128xi32>
    %cst_3 = arith.constant 0.000000e+00 : f32
    %10 = vector.broadcast %cst_3 : f32 to vector<64x128xf32>
    %11 = arith.select %9, %7, %10 : vector<64x128xi1>, vector<64x128xf32>
    %12 = arith.addf %4, %11 : vector<64x128xf32>
    %13 = vector.extract_strided_slice %1 {offsets = [1, 0], sizes = [1, 128], strides = [1, 1]} : vector<16x128xf32> to vector<1x128xf32>
    %14 = vector.shape_cast %13 : vector<1x128xf32> to vector<1x128xf32>
    %15 = vector.broadcast %14 : vector<1x128xf32> to vector<64x128xf32>
    %c1_i32 = arith.constant 1 : i32
    %16 = vector.broadcast %c1_i32 : i32 to vector<64x128xi32>
    %17 = arith.cmpi eq, %3, %16 : vector<64x128xi32>
    %cst_4 = arith.constant 0.000000e+00 : f32
    %18 = vector.broadcast %cst_4 : f32 to vector<64x128xf32>
    %19 = arith.select %17, %15, %18 : vector<64x128xi1>, vector<64x128xf32>
    %20 = arith.addf %12, %19 : vector<64x128xf32>
    %21 = vector.extract_strided_slice %1 {offsets = [2, 0], sizes = [1, 128], strides = [1, 1]} : vector<16x128xf32> to vector<1x128xf32>
    %22 = vector.shape_cast %21 : vector<1x128xf32> to vector<1x128xf32>
    %23 = vector.broadcast %22 : vector<1x128xf32> to vector<64x128xf32>
    %c2_i32 = arith.constant 2 : i32
    %24 = vector.broadcast %c2_i32 : i32 to vector<64x128xi32>
    %25 = arith.cmpi eq, %3, %24 : vector<64x128xi32>
    %cst_5 = arith.constant 0.000000e+00 : f32
    %26 = vector.broadcast %cst_5 : f32 to vector<64x128xf32>
    %27 = arith.select %25, %23, %26 : vector<64x128xi1>, vector<64x128xf32>
    %28 = arith.addf %20, %27 : vector<64x128xf32>
    %29 = vector.extract_strided_slice %1 {offsets = [3, 0], sizes = [1, 128], strides = [1, 1]} : vector<16x128xf32> to vector<1x128xf32>
    %30 = vector.shape_cast %29 : vector<1x128xf32> to vector<1x128xf32>
    %31 = vector.broadcast %30 : vector<1x128xf32> to vector<64x128xf32>
    %c3_i32 = arith.constant 3 : i32
    %32 = vector.broadcast %c3_i32 : i32 to vector<64x128xi32>
    %33 = arith.cmpi eq, %3, %32 : vector<64x128xi32>
    %cst_6 = arith.constant 0.000000e+00 : f32
    %34 = vector.broadcast %cst_6 : f32 to vector<64x128xf32>
    %35 = arith.select %33, %31, %34 : vector<64x128xi1>, vector<64x128xf32>
    %36 = arith.addf %28, %35 : vector<64x128xf32>
    %37 = vector.extract_strided_slice %1 {offsets = [4, 0], sizes = [1, 128], strides = [1, 1]} : vector<16x128xf32> to vector<1x128xf32>
    %38 = vector.shape_cast %37 : vector<1x128xf32> to vector<1x128xf32>
    %39 = vector.broadcast %38 : vector<1x128xf32> to vector<64x128xf32>
    %c4_i32 = arith.constant 4 : i32
    %40 = vector.broadcast %c4_i32 : i32 to vector<64x128xi32>
    %41 = arith.cmpi eq, %3, %40 : vector<64x128xi32>
    %cst_7 = arith.constant 0.000000e+00 : f32
    %42 = vector.broadcast %cst_7 : f32 to vector<64x128xf32>
    %43 = arith.select %41, %39, %42 : vector<64x128xi1>, vector<64x128xf32>
    %44 = arith.addf %36, %43 : vector<64x128xf32>
    %45 = vector.extract_strided_slice %1 {offsets = [5, 0], sizes = [1, 128], strides = [1, 1]} : vector<16x128xf32> to vector<1x128xf32>
    %46 = vector.shape_cast %45 : vector<1x128xf32> to vector<1x128xf32>
    %47 = vector.broadcast %46 : vector<1x128xf32> to vector<64x128xf32>
    %c5_i32 = arith.constant 5 : i32
    %48 = vector.broadcast %c5_i32 : i32 to vector<64x128xi32>
    %49 = arith.cmpi eq, %3, %48 : vector<64x128xi32>
    %cst_8 = arith.constant 0.000000e+00 : f32
    %50 = vector.broadcast %cst_8 : f32 to vector<64x128xf32>
    %51 = arith.select %49, %47, %50 : vector<64x128xi1>, vector<64x128xf32>
    %52 = arith.addf %44, %51 : vector<64x128xf32>
    %53 = vector.extract_strided_slice %1 {offsets = [6, 0], sizes = [1, 128], strides = [1, 1]} : vector<16x128xf32> to vector<1x128xf32>
    %54 = vector.shape_cast %53 : vector<1x128xf32> to vector<1x128xf32>
    %55 = vector.broadcast %54 : vector<1x128xf32> to vector<64x128xf32>
    %c6_i32 = arith.constant 6 : i32
    %56 = vector.broadcast %c6_i32 : i32 to vector<64x128xi32>
    %57 = arith.cmpi eq, %3, %56 : vector<64x128xi32>
    %cst_9 = arith.constant 0.000000e+00 : f32
    %58 = vector.broadcast %cst_9 : f32 to vector<64x128xf32>
    %59 = arith.select %57, %55, %58 : vector<64x128xi1>, vector<64x128xf32>
    %60 = arith.addf %52, %59 : vector<64x128xf32>
    %61 = vector.extract_strided_slice %1 {offsets = [7, 0], sizes = [1, 128], strides = [1, 1]} : vector<16x128xf32> to vector<1x128xf32>
    %62 = vector.shape_cast %61 : vector<1x128xf32> to vector<1x128xf32>
    %63 = vector.broadcast %62 : vector<1x128xf32> to vector<64x128xf32>
    %c7_i32 = arith.constant 7 : i32
    %64 = vector.broadcast %c7_i32 : i32 to vector<64x128xi32>
    %65 = arith.cmpi eq, %3, %64 : vector<64x128xi32>
    %cst_10 = arith.constant 0.000000e+00 : f32
    %66 = vector.broadcast %cst_10 : f32 to vector<64x128xf32>
    %67 = arith.select %65, %63, %66 : vector<64x128xi1>, vector<64x128xf32>
    %68 = arith.addf %60, %67 : vector<64x128xf32>
    %69 = vector.extract_strided_slice %1 {offsets = [8, 0], sizes = [1, 128], strides = [1, 1]} : vector<16x128xf32> to vector<1x128xf32>
    %70 = vector.shape_cast %69 : vector<1x128xf32> to vector<1x128xf32>
    %71 = vector.broadcast %70 : vector<1x128xf32> to vector<64x128xf32>
    %c8_i32 = arith.constant 8 : i32
    %72 = vector.broadcast %c8_i32 : i32 to vector<64x128xi32>
    %73 = arith.cmpi eq, %3, %72 : vector<64x128xi32>
    %cst_11 = arith.constant 0.000000e+00 : f32
    %74 = vector.broadcast %cst_11 : f32 to vector<64x128xf32>
    %75 = arith.select %73, %71, %74 : vector<64x128xi1>, vector<64x128xf32>
    %76 = arith.addf %68, %75 : vector<64x128xf32>
    %77 = vector.extract_strided_slice %1 {offsets = [9, 0], sizes = [1, 128], strides = [1, 1]} : vector<16x128xf32> to vector<1x128xf32>
    %78 = vector.shape_cast %77 : vector<1x128xf32> to vector<1x128xf32>
    %79 = vector.broadcast %78 : vector<1x128xf32> to vector<64x128xf32>
    %c9_i32 = arith.constant 9 : i32
    %80 = vector.broadcast %c9_i32 : i32 to vector<64x128xi32>
    %81 = arith.cmpi eq, %3, %80 : vector<64x128xi32>
    %cst_12 = arith.constant 0.000000e+00 : f32
    %82 = vector.broadcast %cst_12 : f32 to vector<64x128xf32>
    %83 = arith.select %81, %79, %82 : vector<64x128xi1>, vector<64x128xf32>
    %84 = arith.addf %76, %83 : vector<64x128xf32>
    %85 = vector.extract_strided_slice %1 {offsets = [10, 0], sizes = [1, 128], strides = [1, 1]} : vector<16x128xf32> to vector<1x128xf32>
    %86 = vector.shape_cast %85 : vector<1x128xf32> to vector<1x128xf32>
    %87 = vector.broadcast %86 : vector<1x128xf32> to vector<64x128xf32>
    %c10_i32 = arith.constant 10 : i32
    %88 = vector.broadcast %c10_i32 : i32 to vector<64x128xi32>
    %89 = arith.cmpi eq, %3, %88 : vector<64x128xi32>
    %cst_13 = arith.constant 0.000000e+00 : f32
    %90 = vector.broadcast %cst_13 : f32 to vector<64x128xf32>
    %91 = arith.select %89, %87, %90 : vector<64x128xi1>, vector<64x128xf32>
    %92 = arith.addf %84, %91 : vector<64x128xf32>
    %93 = vector.extract_strided_slice %1 {offsets = [11, 0], sizes = [1, 128], strides = [1, 1]} : vector<16x128xf32> to vector<1x128xf32>
    %94 = vector.shape_cast %93 : vector<1x128xf32> to vector<1x128xf32>
    %95 = vector.broadcast %94 : vector<1x128xf32> to vector<64x128xf32>
    %c11_i32 = arith.constant 11 : i32
    %96 = vector.broadcast %c11_i32 : i32 to vector<64x128xi32>
    %97 = arith.cmpi eq, %3, %96 : vector<64x128xi32>
    %cst_14 = arith.constant 0.000000e+00 : f32
    %98 = vector.broadcast %cst_14 : f32 to vector<64x128xf32>
    %99 = arith.select %97, %95, %98 : vector<64x128xi1>, vector<64x128xf32>
    %100 = arith.addf %92, %99 : vector<64x128xf32>
    %101 = vector.extract_strided_slice %1 {offsets = [12, 0], sizes = [1, 128], strides = [1, 1]} : vector<16x128xf32> to vector<1x128xf32>
    %102 = vector.shape_cast %101 : vector<1x128xf32> to vector<1x128xf32>
    %103 = vector.broadcast %102 : vector<1x128xf32> to vector<64x128xf32>
    %c12_i32 = arith.constant 12 : i32
    %104 = vector.broadcast %c12_i32 : i32 to vector<64x128xi32>
    %105 = arith.cmpi eq, %3, %104 : vector<64x128xi32>
    %cst_15 = arith.constant 0.000000e+00 : f32
    %106 = vector.broadcast %cst_15 : f32 to vector<64x128xf32>
    %107 = arith.select %105, %103, %106 : vector<64x128xi1>, vector<64x128xf32>
    %108 = arith.addf %100, %107 : vector<64x128xf32>
    %109 = vector.extract_strided_slice %1 {offsets = [13, 0], sizes = [1, 128], strides = [1, 1]} : vector<16x128xf32> to vector<1x128xf32>
    %110 = vector.shape_cast %109 : vector<1x128xf32> to vector<1x128xf32>
    %111 = vector.broadcast %110 : vector<1x128xf32> to vector<64x128xf32>
    %c13_i32 = arith.constant 13 : i32
    %112 = vector.broadcast %c13_i32 : i32 to vector<64x128xi32>
    %113 = arith.cmpi eq, %3, %112 : vector<64x128xi32>
    %cst_16 = arith.constant 0.000000e+00 : f32
    %114 = vector.broadcast %cst_16 : f32 to vector<64x128xf32>
    %115 = arith.select %113, %111, %114 : vector<64x128xi1>, vector<64x128xf32>
    %116 = arith.addf %108, %115 : vector<64x128xf32>
    %117 = vector.extract_strided_slice %1 {offsets = [14, 0], sizes = [1, 128], strides = [1, 1]} : vector<16x128xf32> to vector<1x128xf32>
    %118 = vector.shape_cast %117 : vector<1x128xf32> to vector<1x128xf32>
    %119 = vector.broadcast %118 : vector<1x128xf32> to vector<64x128xf32>
    %c14_i32 = arith.constant 14 : i32
    %120 = vector.broadcast %c14_i32 : i32 to vector<64x128xi32>
    %121 = arith.cmpi eq, %3, %120 : vector<64x128xi32>
    %cst_17 = arith.constant 0.000000e+00 : f32
    %122 = vector.broadcast %cst_17 : f32 to vector<64x128xf32>
    %123 = arith.select %121, %119, %122 : vector<64x128xi1>, vector<64x128xf32>
    %124 = arith.addf %116, %123 : vector<64x128xf32>
    %125 = vector.extract_strided_slice %1 {offsets = [15, 0], sizes = [1, 128], strides = [1, 1]} : vector<16x128xf32> to vector<1x128xf32>
    %126 = vector.shape_cast %125 : vector<1x128xf32> to vector<1x128xf32>
    %127 = vector.broadcast %126 : vector<1x128xf32> to vector<64x128xf32>
    %c15_i32 = arith.constant 15 : i32
    %128 = vector.broadcast %c15_i32 : i32 to vector<64x128xi32>
    %129 = arith.cmpi eq, %3, %128 : vector<64x128xi32>
    %cst_18 = arith.constant 0.000000e+00 : f32
    %130 = vector.broadcast %cst_18 : f32 to vector<64x128xf32>
    %131 = arith.select %129, %127, %130 : vector<64x128xi1>, vector<64x128xf32>
    %132 = arith.addf %124, %131 : vector<64x128xf32>
    %c0_19 = arith.constant 0 : index
    %c0_20 = arith.constant 0 : index
    %133 = vector.load %arg2[%c0_19, %c0_20] : memref<128x128xf32, #tpu.memory_space<vmem>>, vector<128x128xf32>
    %cst_21 = arith.constant dense<0.000000e+00> : vector<64x128xf32>
    %134 = tpu.matmul %132, %133, %cst_21 {dimension_numbers = #tpu.dot_dimension_numbers<[1], [0], [0], [1], [0, 0, 1, 1], [], []>} : vector<64x128xf32>, vector<128x128xf32>, vector<64x128xf32> -> vector<64x128xf32>
    %c0_22 = arith.constant 0 : index
    %c0_23 = arith.constant 0 : index
    %135 = vector.load %arg4[%c0_22, %c0_23] : memref<1x128xf32, #tpu.memory_space<vmem>>, vector<1x128xf32>
    %136 = vector.broadcast %135 : vector<1x128xf32> to vector<64x128xf32>
    %137 = arith.addf %134, %136 : vector<64x128xf32>
    %c0_24 = arith.constant 0 : index
    %c0_25 = arith.constant 0 : index
    %138 = vector.load %arg3[%c0_24, %c0_25] : memref<128x128xf32, #tpu.memory_space<vmem>>, vector<128x128xf32>
    %cst_26 = arith.constant 0.000000e+00 : f32
    %139 = vector.broadcast %cst_26 : f32 to vector<8x128xf32>
    %140 = vector.extract_strided_slice %137 {offsets = [0, 0], sizes = [8, 128], strides = [1, 1]} : vector<64x128xf32> to vector<8x128xf32>
    %cst_27 = arith.constant dense<0.000000e+00> : vector<8x128xf32>
    %141 = tpu.matmul %139, %138, %cst_27 {dimension_numbers = #tpu.dot_dimension_numbers<[1], [0], [0], [1], [0, 0, 1, 1], [], []>} : vector<8x128xf32>, vector<128x128xf32>, vector<8x128xf32> -> vector<8x128xf32>
    %142 = arith.addf %140, %141 : vector<8x128xf32>
    %143 = math.tanh %142 : vector<8x128xf32>
    %144 = vector.extract_strided_slice %137 {offsets = [8, 0], sizes = [8, 128], strides = [1, 1]} : vector<64x128xf32> to vector<8x128xf32>
    %cst_28 = arith.constant dense<0.000000e+00> : vector<8x128xf32>
    %145 = tpu.matmul %143, %138, %cst_28 {dimension_numbers = #tpu.dot_dimension_numbers<[1], [0], [0], [1], [0, 0, 1, 1], [], []>} : vector<8x128xf32>, vector<128x128xf32>, vector<8x128xf32> -> vector<8x128xf32>
    %146 = arith.addf %144, %145 : vector<8x128xf32>
    %147 = math.tanh %146 : vector<8x128xf32>
    %148 = vector.extract_strided_slice %137 {offsets = [16, 0], sizes = [8, 128], strides = [1, 1]} : vector<64x128xf32> to vector<8x128xf32>
    %cst_29 = arith.constant dense<0.000000e+00> : vector<8x128xf32>
    %149 = tpu.matmul %147, %138, %cst_29 {dimension_numbers = #tpu.dot_dimension_numbers<[1], [0], [0], [1], [0, 0, 1, 1], [], []>} : vector<8x128xf32>, vector<128x128xf32>, vector<8x128xf32> -> vector<8x128xf32>
    %150 = arith.addf %148, %149 : vector<8x128xf32>
    %151 = math.tanh %150 : vector<8x128xf32>
    %152 = vector.extract_strided_slice %137 {offsets = [24, 0], sizes = [8, 128], strides = [1, 1]} : vector<64x128xf32> to vector<8x128xf32>
    %cst_30 = arith.constant dense<0.000000e+00> : vector<8x128xf32>
    %153 = tpu.matmul %151, %138, %cst_30 {dimension_numbers = #tpu.dot_dimension_numbers<[1], [0], [0], [1], [0, 0, 1, 1], [], []>} : vector<8x128xf32>, vector<128x128xf32>, vector<8x128xf32> -> vector<8x128xf32>
    %154 = arith.addf %152, %153 : vector<8x128xf32>
    %155 = math.tanh %154 : vector<8x128xf32>
    %156 = vector.extract_strided_slice %137 {offsets = [32, 0], sizes = [8, 128], strides = [1, 1]} : vector<64x128xf32> to vector<8x128xf32>
    %cst_31 = arith.constant dense<0.000000e+00> : vector<8x128xf32>
    %157 = tpu.matmul %155, %138, %cst_31 {dimension_numbers = #tpu.dot_dimension_numbers<[1], [0], [0], [1], [0, 0, 1, 1], [], []>} : vector<8x128xf32>, vector<128x128xf32>, vector<8x128xf32> -> vector<8x128xf32>
    %158 = arith.addf %156, %157 : vector<8x128xf32>
    %159 = math.tanh %158 : vector<8x128xf32>
    %160 = vector.extract_strided_slice %137 {offsets = [40, 0], sizes = [8, 128], strides = [1, 1]} : vector<64x128xf32> to vector<8x128xf32>
    %cst_32 = arith.constant dense<0.000000e+00> : vector<8x128xf32>
    %161 = tpu.matmul %159, %138, %cst_32 {dimension_numbers = #tpu.dot_dimension_numbers<[1], [0], [0], [1], [0, 0, 1, 1], [], []>} : vector<8x128xf32>, vector<128x128xf32>, vector<8x128xf32> -> vector<8x128xf32>
    %162 = arith.addf %160, %161 : vector<8x128xf32>
    %163 = math.tanh %162 : vector<8x128xf32>
    %164 = vector.extract_strided_slice %137 {offsets = [48, 0], sizes = [8, 128], strides = [1, 1]} : vector<64x128xf32> to vector<8x128xf32>
    %cst_33 = arith.constant dense<0.000000e+00> : vector<8x128xf32>
    %165 = tpu.matmul %163, %138, %cst_33 {dimension_numbers = #tpu.dot_dimension_numbers<[1], [0], [0], [1], [0, 0, 1, 1], [], []>} : vector<8x128xf32>, vector<128x128xf32>, vector<8x128xf32> -> vector<8x128xf32>
    %166 = arith.addf %164, %165 : vector<8x128xf32>
    %167 = math.tanh %166 : vector<8x128xf32>
    %168 = vector.extract_strided_slice %137 {offsets = [56, 0], sizes = [8, 128], strides = [1, 1]} : vector<64x128xf32> to vector<8x128xf32>
    %cst_34 = arith.constant dense<0.000000e+00> : vector<8x128xf32>
    %169 = tpu.matmul %167, %138, %cst_34 {dimension_numbers = #tpu.dot_dimension_numbers<[1], [0], [0], [1], [0, 0, 1, 1], [], []>} : vector<8x128xf32>, vector<128x128xf32>, vector<8x128xf32> -> vector<8x128xf32>
    %170 = arith.addf %168, %169 : vector<8x128xf32>
    %171 = math.tanh %170 : vector<8x128xf32>
    %172 = tpu.concatenate %143, %147, %151, %155, %159, %163, %167, %171 in 0 : vector<8x128xf32>, vector<8x128xf32>, vector<8x128xf32>, vector<8x128xf32>, vector<8x128xf32>, vector<8x128xf32>, vector<8x128xf32>, vector<8x128xf32> -> vector<64x128xf32>
    %c0_35 = arith.constant 0 : index
    %c0_36 = arith.constant 0 : index
    %173 = vector.load %arg5[%c0_35, %c0_36] : memref<128x128xf32, #tpu.memory_space<vmem>>, vector<128x128xf32>
    %cst_37 = arith.constant dense<0.000000e+00> : vector<64x128xf32>
    %174 = tpu.matmul %172, %173, %cst_37 {dimension_numbers = #tpu.dot_dimension_numbers<[1], [0], [0], [1], [0, 0, 1, 1], [], []>} : vector<64x128xf32>, vector<128x128xf32>, vector<64x128xf32> -> vector<64x128xf32>
    %175 = math.tanh %174 : vector<64x128xf32>
    %c0_38 = arith.constant 0 : index
    %c0_39 = arith.constant 0 : index
    %176 = vector.load %arg6[%c0_38, %c0_39] : memref<64x128xf32, #tpu.memory_space<vmem>>, vector<64x128xf32>
    tpu.vector_store %arg6[%c0_38, %c0_39], %175 {strides = array<i32>} : memref<64x128xf32, #tpu.memory_space<vmem>>, vector<64x128xf32>,
    return
  }
}

</mosaic_0001>

<llo_original>
// kernel: tpu_custom_call.1
$region0: #{tpu_custom_call.1}
  #allocation0 [shape = 'u32[]', space=smem, size = 0x4, offset = 0x4, fixed_abs, tag = 'smem constant byte address 0x4 - core index']
  #allocation1 [shape = 'u32[144,128]{1,0:T(1,128)}', space=vmem, size = 0x12000, scoped, tag = 'internal scratch']
  %s0 = inlined_call_operand.vmem [shape: s32[64,1], index: 0, kind: input, shape index: {}]
  %s1 = inlined_call_operand.vmem [shape: f32[16,128], index: 1, kind: input, shape index: {}]
  %s2 = inlined_call_operand.hbm [shape: f32[128,128], index: 2, kind: input, shape index: {}]
  %s3 = inlined_call_operand.hbm [shape: f32[128,128], index: 3, kind: input, shape index: {}]
  %s4 = inlined_call_operand.vmem [shape: f32[1,128], index: 4, kind: input, shape index: {}]
  %s5 = inlined_call_operand.hbm [shape: f32[128,128], index: 5, kind: input, shape index: {}]
  %s6 = inlined_call_operand.hbm [shape: f32[64,128], index: 6, kind: output, shape index: {}]
  %s7 = sld [smem:[#allocation0]]
  $region46: #{tpu_custom_call.1} parent=0
    _
  %s9 = ssub.s32 1, %s7
  %s10 = scalar_select 0, %s9, %s7
  $region1: #{tpu_custom_call.1} parent=0
    #allocation2 [shape = 'u8[65536]{0}', space=vmem, size = 0x10000, scoped, tag = 'input window, operand 2, single buffered']
    #allocation3 [shape = 's32[1]{0}', space=sflag, size = 0x4, scoped, tag = 'scoped memory for tpu_custom_call.1']
    #allocation4 [shape = 's32[1]{0}', space=sflag, size = 0x4, scoped, tag = 'scoped memory for tpu_custom_call.1']
    #allocation5 [shape = 'u8[65536]{0}', space=vmem, size = 0x10000, scoped, tag = 'input window, operand 3, single buffered']
    #allocation6 [shape = 's32[1]{0}', space=sflag, size = 0x4, scoped, tag = 'scoped memory for tpu_custom_call.1']
    #allocation7 [shape = 'u8[65536]{0}', space=vmem, size = 0x10000, scoped, tag = 'input window, operand 5, single buffered']
    #allocation8 [shape = 'u8[32768]{0}', space=vmem, size = 0x8000, scoped, tag = 'output window, operand 0, single buffered']
    %11 = vsyncpa [#allocation3], 0
    %12 = vsyncpa [#allocation6], 0
    %13 = vsyncpa [#allocation4], 0
    // Predicated region
    $region2: #{tpu_custom_call.1} parent=1 // pred_check
      _
    $region3: #{tpu_custom_call.1} parent=1 // pred_check_branch
      %15 = sbr.rel (0) target = $region5
    $region4: #{tpu_custom_call.1} parent=1 // pred_region
      _
    $region5: #{tpu_custom_call.1} parent=1 // pred_fallthru
      _
    // Predicated region
    $region6: #{tpu_custom_call.1} parent=1 // pred_check
      _
    $region7: #{tpu_custom_call.1} parent=1 // pred_check_branch
      %17 = sbr.rel (0) target = $region9
    $region8: #{tpu_custom_call.1} parent=1 // pred_region
      _
    $region9: #{tpu_custom_call.1} parent=1 // pred_fallthru
      _
    // Predicated region
    $region10: #{tpu_custom_call.1} parent=1 // pred_check
      _
    $region11: #{tpu_custom_call.1} parent=1 // pred_check_branch
      %19 = sbr.rel (0) target = $region13
    $region12: #{tpu_custom_call.1} parent=1 // pred_region
      %s21 = ssub.s32 2048, 2048
      %22 = vsyncadd [#allocation3], %s21
      %s23 = sshll.u32 [#allocation2], 4
      %s24 = int_to_ptr.vmem [resolvable:$true] %s23
      %29 = dma.hbm_to_vmem [thread:$0]  %s2, 2048, %s24, [#allocation3], 128, 128, 8
    $region13: #{tpu_custom_call.1} parent=1 // pred_fallthru
      _
    // Predicated region
    $region14: #{tpu_custom_call.1} parent=1 // pred_check
      _
    $region15: #{tpu_custom_call.1} parent=1 // pred_check_branch
      %31 = sbr.rel (0) target = $region17
    $region16: #{tpu_custom_call.1} parent=1 // pred_region
      %s33 = ssub.s32 2048, 2048
      %34 = vsyncadd [#allocation6], %s33
      %s35 = sshll.u32 [#allocation5], 4
      %s36 = int_to_ptr.vmem [resolvable:$true] %s35
      %41 = dma.hbm_to_vmem [thread:$0]  %s3, 2048, %s36, [#allocation6], 128, 128, 8
    $region17: #{tpu_custom_call.1} parent=1 // pred_fallthru
      _
    // Predicated region
    $region18: #{tpu_custom_call.1} parent=1 // pred_check
      _
    $region19: #{tpu_custom_call.1} parent=1 // pred_check_branch
      %43 = sbr.rel (0) target = $region21
    $region20: #{tpu_custom_call.1} parent=1 // pred_region
      _
    $region21: #{tpu_custom_call.1} parent=1 // pred_fallthru
      _
    // Predicated region
    $region22: #{tpu_custom_call.1} parent=1 // pred_check
      _
    $region23: #{tpu_custom_call.1} parent=1 // pred_check_branch
      %45 = sbr.rel (0) target = $region25
    $region24: #{tpu_custom_call.1} parent=1 // pred_region
      %s47 = ssub.s32 2048, 2048
      %48 = vsyncadd [#allocation6], %s47
      %s49 = sshll.u32 [#allocation7], 4
      %s50 = int_to_ptr.vmem [resolvable:$true] %s49
      %55 = dma.hbm_to_vmem [thread:$0]  %s5, 2048, %s50, [#allocation6], 128, 128, 8
    $region25: #{tpu_custom_call.1} parent=1 // pred_fallthru
      _
    // Predicated region
    $region26: #{tpu_custom_call.1} parent=1 // pred_check
      _
    $region27: #{tpu_custom_call.1} parent=1 // pred_check_branch
      %57 = sbr.rel (0) target = $region29
    $region28: #{tpu_custom_call.1} parent=1 // pred_region
      %58 = dma.done [#allocation3], 2048
    $region29: #{tpu_custom_call.1} parent=1 // pred_fallthru
      _
    // Predicated region
    $region30: #{tpu_custom_call.1} parent=1 // pred_check
      _
    $region31: #{tpu_custom_call.1} parent=1 // pred_check_branch
      %60 = sbr.rel (0) target = $region33
    $region32: #{tpu_custom_call.1} parent=1 // pred_region
      %61 = dma.done [#allocation6], 2048
    $region33: #{tpu_custom_call.1} parent=1 // pred_fallthru
      _
    // Predicated region
    $region34: #{tpu_custom_call.1} parent=1 // pred_check
      _
    $region35: #{tpu_custom_call.1} parent=1 // pred_check_branch
      %63 = sbr.rel (0) target = $region37
    $region36: #{tpu_custom_call.1} parent=1 // pred_region
      %64 = dma.done [#allocation6], 2048
    $region37: #{tpu_custom_call.1} parent=1 // pred_fallthru
      _
    %v65 = vld [vmem:[%s0] sm:$0xff]
    %v66 = vld [vmem:[%s0 + $0x8] sm:$0xff]
    %v67 = vld [vmem:[%s0 + $0x10] sm:$0xff]
    %v68 = vld [vmem:[%s0 + $0x18] sm:$0xff]
    %v69 = vld [vmem:[%s0 + $0x20] sm:$0xff]
    %v70 = vld [vmem:[%s0 + $0x28] sm:$0xff]
    %v71 = vld [vmem:[%s0 + $0x30] sm:$0xff]
    %v72 = vld [vmem:[%s0 + $0x38] sm:$0xff]
    %v73 = vld [vmem:[%s1] sm:$0xff]
    %v74 = vld [vmem:[%s1 + $0x8] sm:$0xff]
    %75 = vset.pattern.permute.xlu0 0
    %76 = vperm.xlu0 %75, %v65
    %v77 = vpop.permute.xlu0 %76
    %78 = vset.pattern.permute.xlu0 0
    %79 = vperm.xlu0 %78, %v66
    %v80 = vpop.permute.xlu0 %79
    %81 = vset.pattern.permute.xlu0 0
    %82 = vperm.xlu0 %81, %v67
    %v83 = vpop.permute.xlu0 %82
    %84 = vset.pattern.permute.xlu0 0
    %85 = vperm.xlu0 %84, %v68
    %v86 = vpop.permute.xlu0 %85
    %87 = vset.pattern.permute.xlu0 0
    %88 = vperm.xlu0 %87, %v69
    %v89 = vpop.permute.xlu0 %88
    %90 = vset.pattern.permute.xlu0 0
    %91 = vperm.xlu0 %90, %v70
    %v92 = vpop.permute.xlu0 %91
    %93 = vset.pattern.permute.xlu0 0
    %94 = vperm.xlu0 %93, %v71
    %v95 = vpop.permute.xlu0 %94
    %96 = vset.pattern.permute.xlu0 0
    %97 = vperm.xlu0 %96, %v72
    %v98 = vpop.permute.xlu0 %97
    %v99 = vlaneseq
    %v100 = vshrl.u32 %v99, 7
    %v101 = vsub.s32 0, %v100
    %v102 = vrot.slane %v73, %v101
    %vm103 = vcmp.eq.s32.totalorder %v77, 0
    %vm104 = vcmp.eq.s32.totalorder %v80, 0
    %vm105 = vcmp.eq.s32.totalorder %v83, 0
    %vm106 = vcmp.eq.s32.totalorder %v86, 0
    %vm107 = vcmp.eq.s32.totalorder %v89, 0
    %vm108 = vcmp.eq.s32.totalorder %v92, 0
    %vm109 = vcmp.eq.s32.totalorder %v95, 0
    %vm110 = vcmp.eq.s32.totalorder %v98, 0
    %v111 = vsel %vm103, %v102, 0.0
    %v112 = vsel %vm104, %v102, 0.0
    %v113 = vsel %vm105, %v102, 0.0
    %v114 = vsel %vm106, %v102, 0.0
    %v115 = vsel %vm107, %v102, 0.0
    %v116 = vsel %vm108, %v102, 0.0
    %v117 = vsel %vm109, %v102, 0.0
    %v118 = vsel %vm110, %v102, 0.0
    %v119 = vadd.f32 %v111, 0.0
    %v120 = vadd.f32 %v112, 0.0
    %v121 = vadd.f32 %v113, 0.0
    %v122 = vadd.f32 %v114, 0.0
    %v123 = vadd.f32 %v115, 0.0
    %v124 = vadd.f32 %v116, 0.0
    %v125 = vadd.f32 %v117, 0.0
    %v126 = vadd.f32 %v118, 0.0
    %v127 = vlaneseq
    %v128 = vshrl.u32 %v127, 7
    %v129 = vsub.s32 1, %v128
    %v130 = vrot.slane %v73, %v129
    %vm131 = vcmp.eq.s32.totalorder %v77, 1
    %vm132 = vcmp.eq.s32.totalorder %v80, 1
    %vm133 = vcmp.eq.s32.totalorder %v83, 1
    %vm134 = vcmp.eq.s32.totalorder %v86, 1
    %vm135 = vcmp.eq.s32.totalorder %v89, 1
    %vm136 = vcmp.eq.s32.totalorder %v92, 1
    %vm137 = vcmp.eq.s32.totalorder %v95, 1
    %vm138 = vcmp.eq.s32.totalorder %v98, 1
    %v139 = vsel %vm131, %v130, 0.0
    %v140 = vsel %vm132, %v130, 0.0
    %v141 = vsel %vm133, %v130, 0.0
    %v142 = vsel %vm134, %v130, 0.0
    %v143 = vsel %vm135, %v130, 0.0
    %v144 = vsel %vm136, %v130, 0.0
    %v145 = vsel %vm137, %v130, 0.0
    %v146 = vsel %vm138, %v130, 0.0
    %v147 = vadd.f32 %v119, %v139
    %v148 = vadd.f32 %v120, %v140
    %v149 = vadd.f32 %v121, %v141
    %v150 = vadd.f32 %v122, %v142
    %v151 = vadd.f32 %v123, %v143
    %v152 = vadd.f32 %v124, %v144
    %v153 = vadd.f32 %v125, %v145
    %v154 = vadd.f32 %v126, %v146
    %v155 = vlaneseq
    %v156 = vshrl.u32 %v155, 7
    %v157 = vsub.s32 2, %v156
    %v158 = vrot.slane %v73, %v157
    %vm159 = vcmp.eq.s32.totalorder %v77, 2
    %vm160 = vcmp.eq.s32.totalorder %v80, 2
    %vm161 = vcmp.eq.s32.totalorder %v83, 2
    %vm162 = vcmp.eq.s32.totalorder %v86, 2
    %vm163 = vcmp.eq.s32.totalorder %v89, 2
    %vm164 = vcmp.eq.s32.totalorder %v92, 2
    %vm165 = vcmp.eq.s32.totalorder %v95, 2
    %vm166 = vcmp.eq.s32.totalorder %v98, 2
    %v167 = vsel %vm159, %v158, 0.0
    %v168 = vsel %vm160, %v158, 0.0
    %v169 = vsel %vm161, %v158, 0.0
    %v170 = vsel %vm162, %v158, 0.0
    %v171 = vsel %vm163, %v158, 0.0
    %v172 = vsel %vm164, %v158, 0.0
    %v173 = vsel %vm165, %v158, 0.0
    %v174 = vsel %vm166, %v158, 0.0
    %v175 = vadd.f32 %v147, %v167
    %v176 = vadd.f32 %v148, %v168
    %v177 = vadd.f32 %v149, %v169
    %v178 = vadd.f32 %v150, %v170
    %v179 = vadd.f32 %v151, %v171
    %v180 = vadd.f32 %v152, %v172
    %v181 = vadd.f32 %v153, %v173
    %v182 = vadd.f32 %v154, %v174
    %v183 = vlaneseq
    %v184 = vshrl.u32 %v183, 7
    %v185 = vsub.s32 3, %v184
    %v186 = vrot.slane %v73, %v185
    %vm187 = vcmp.eq.s32.totalorder %v77, 3
    %vm188 = vcmp.eq.s32.totalorder %v80, 3
    %vm189 = vcmp.eq.s32.totalorder %v83, 3
    %vm190 = vcmp.eq.s32.totalorder %v86, 3
    %vm191 = vcmp.eq.s32.totalorder %v89, 3
    %vm192 = vcmp.eq.s32.totalorder %v92, 3
    %vm193 = vcmp.eq.s32.totalorder %v95, 3
    %vm194 = vcmp.eq.s32.totalorder %v98, 3
    %v195 = vsel %vm187, %v186, 0.0
    %v196 = vsel %vm188, %v186, 0.0
    %v197 = vsel %vm189, %v186, 0.0
    %v198 = vsel %vm190, %v186, 0.0
    %v199 = vsel %vm191, %v186, 0.0
    %v200 = vsel %vm192, %v186, 0.0
    %v201 = vsel %vm193, %v186, 0.0
    %v202 = vsel %vm194, %v186, 0.0
    %v203 = vadd.f32 %v175, %v195
    %v204 = vadd.f32 %v176, %v196
    %v205 = vadd.f32 %v177, %v197
    %v206 = vadd.f32 %v178, %v198
    %v207 = vadd.f32 %v179, %v199
    %v208 = vadd.f32 %v180, %v200
    %v209 = vadd.f32 %v181, %v201
    %v210 = vadd.f32 %v182, %v202
    %v211 = vlaneseq
    %v212 = vshrl.u32 %v211, 7
    %v213 = vsub.s32 4, %v212
    %v214 = vrot.slane %v73, %v213
    %vm215 = vcmp.eq.s32.totalorder %v77, 4
    %vm216 = vcmp.eq.s32.totalorder %v80, 4
    %vm217 = vcmp.eq.s32.totalorder %v83, 4
    %vm218 = vcmp.eq.s32.totalorder %v86, 4
    %vm219 = vcmp.eq.s32.totalorder %v89, 4
    %vm220 = vcmp.eq.s32.totalorder %v92, 4
    %vm221 = vcmp.eq.s32.totalorder %v95, 4
    %vm222 = vcmp.eq.s32.totalorder %v98, 4
    %v223 = vsel %vm215, %v214, 0.0
    %v224 = vsel %vm216, %v214, 0.0
    %v225 = vsel %vm217, %v214, 0.0
    %v226 = vsel %vm218, %v214, 0.0
    %v227 = vsel %vm219, %v214, 0.0
    %v228 = vsel %vm220, %v214, 0.0
    %v229 = vsel %vm221, %v214, 0.0
    %v230 = vsel %vm222, %v214, 0.0
    %v231 = vadd.f32 %v203, %v223
    %v232 = vadd.f32 %v204, %v224
    %v233 = vadd.f32 %v205, %v225
    %v234 = vadd.f32 %v206, %v226
    %v235 = vadd.f32 %v207, %v227
    %v236 = vadd.f32 %v208, %v228
    %v237 = vadd.f32 %v209, %v229
    %v238 = vadd.f32 %v210, %v230
    %v239 = vlaneseq
    %v240 = vshrl.u32 %v239, 7
    %v241 = vsub.s32 5, %v240
    %v242 = vrot.slane %v73, %v241
    %vm243 = vcmp.eq.s32.totalorder %v77, 5
    %vm244 = vcmp.eq.s32.totalorder %v80, 5
    %vm245 = vcmp.eq.s32.totalorder %v83, 5
    %vm246 = vcmp.eq.s32.totalorder %v86, 5
    %vm247 = vcmp.eq.s32.totalorder %v89, 5
    %vm248 = vcmp.eq.s32.totalorder %v92, 5
    %vm249 = vcmp.eq.s32.totalorder %v95, 5
    %vm250 = vcmp.eq.s32.totalorder %v98, 5
    %v251 = vsel %vm243, %v242, 0.0
    %v252 = vsel %vm244, %v242, 0.0
    %v253 = vsel %vm245, %v242, 0.0
    %v254 = vsel %vm246, %v242, 0.0
    %v255 = vsel %vm247, %v242, 0.0
    %v256 = vsel %vm248, %v242, 0.0
    %v257 = vsel %vm249, %v242, 0.0
    %v258 = vsel %vm250, %v242, 0.0
    %v259 = vadd.f32 %v231, %v251
    %v260 = vadd.f32 %v232, %v252
    %v261 = vadd.f32 %v233, %v253
    %v262 = vadd.f32 %v234, %v254
    %v263 = vadd.f32 %v235, %v255
    %v264 = vadd.f32 %v236, %v256
    %v265 = vadd.f32 %v237, %v257
    %v266 = vadd.f32 %v238, %v258
    %v267 = vlaneseq
    %v268 = vshrl.u32 %v267, 7
    %v269 = vsub.s32 6, %v268
    %v270 = vrot.slane %v73, %v269
    %vm271 = vcmp.eq.s32.totalorder %v77, 6
    %vm272 = vcmp.eq.s32.totalorder %v80, 6
    %vm273 = vcmp.eq.s32.totalorder %v83, 6
    %vm274 = vcmp.eq.s32.totalorder %v86, 6
    %vm275 = vcmp.eq.s32.totalorder %v89, 6
    %vm276 = vcmp.eq.s32.totalorder %v92, 6
    %vm277 = vcmp.eq.s32.totalorder %v95, 6
    %vm278 = vcmp.eq.s32.totalorder %v98, 6
    %v279 = vsel %vm271, %v270, 0.0
    %v280 = vsel %vm272, %v270, 0.0
    %v281 = vsel %vm273, %v270, 0.0
    %v282 = vsel %vm274, %v270, 0.0
    %v283 = vsel %vm275, %v270, 0.0
    %v284 = vsel %vm276, %v270, 0.0
    %v285 = vsel %vm277, %v270, 0.0
    %v286 = vsel %vm278, %v270, 0.0
    %v287 = vadd.f32 %v259, %v279
    %v288 = vadd.f32 %v260, %v280
    %v289 = vadd.f32 %v261, %v281
    %v290 = vadd.f32 %v262, %v282
    %v291 = vadd.f32 %v263, %v283
    %v292 = vadd.f32 %v264, %v284
    %v293 = vadd.f32 %v265, %v285
    %v294 = vadd.f32 %v266, %v286
    %v295 = vlaneseq
    %v296 = vshrl.u32 %v295, 7
    %v297 = vsub.s32 7, %v296
    %v298 = vrot.slane %v73, %v297
    %vm299 = vcmp.eq.s32.totalorder %v77, 7
    %vm300 = vcmp.eq.s32.totalorder %v80, 7
    %vm301 = vcmp.eq.s32.totalorder %v83, 7
    %vm302 = vcmp.eq.s32.totalorder %v86, 7
    %vm303 = vcmp.eq.s32.totalorder %v89, 7
    %vm304 = vcmp.eq.s32.totalorder %v92, 7
    %vm305 = vcmp.eq.s32.totalorder %v95, 7
    %vm306 = vcmp.eq.s32.totalorder %v98, 7
    %v307 = vsel %vm299, %v298, 0.0
    %v308 = vsel %vm300, %v298, 0.0
    %v309 = vsel %vm301, %v298, 0.0
    %v310 = vsel %vm302, %v298, 0.0
    %v311 = vsel %vm303, %v298, 0.0
    %v312 = vsel %vm304, %v298, 0.0
    %v313 = vsel %vm305, %v298, 0.0
    %v314 = vsel %vm306, %v298, 0.0
    %v315 = vadd.f32 %v287, %v307
    %v316 = vadd.f32 %v288, %v308
    %v317 = vadd.f32 %v289, %v309
    %v318 = vadd.f32 %v290, %v310
    %v319 = vadd.f32 %v291, %v311
    %v320 = vadd.f32 %v292, %v312
    %v321 = vadd.f32 %v293, %v313
    %v322 = vadd.f32 %v294, %v314
    %v323 = vlaneseq
    %v324 = vshrl.u32 %v323, 7
    %v325 = vsub.s32 0, %v324
    %v326 = vrot.slane %v74, %v325
    %vm327 = vcmp.eq.s32.totalorder %v77, 8
    %vm328 = vcmp.eq.s32.totalorder %v80, 8
    %vm329 = vcmp.eq.s32.totalorder %v83, 8
    %vm330 = vcmp.eq.s32.totalorder %v86, 8
    %vm331 = vcmp.eq.s32.totalorder %v89, 8
    %vm332 = vcmp.eq.s32.totalorder %v92, 8
    %vm333 = vcmp.eq.s32.totalorder %v95, 8
    %vm334 = vcmp.eq.s32.totalorder %v98, 8
    %v335 = vsel %vm327, %v326, 0.0
    %v336 = vsel %vm328, %v326, 0.0
    %v337 = vsel %vm329, %v326, 0.0
    %v338 = vsel %vm330, %v326, 0.0
    %v339 = vsel %vm331, %v326, 0.0
    %v340 = vsel %vm332, %v326, 0.0
    %v341 = vsel %vm333, %v326, 0.0
    %v342 = vsel %vm334, %v326, 0.0
    %v343 = vadd.f32 %v315, %v335
    %v344 = vadd.f32 %v316, %v336
    %v345 = vadd.f32 %v317, %v337
    %v346 = vadd.f32 %v318, %v338
    %v347 = vadd.f32 %v319, %v339
    %v348 = vadd.f32 %v320, %v340
    %v349 = vadd.f32 %v321, %v341
    %v350 = vadd.f32 %v322, %v342
    %v351 = vlaneseq
    %v352 = vshrl.u32 %v351, 7
    %v353 = vsub.s32 1, %v352
    %v354 = vrot.slane %v74, %v353
    %vm355 = vcmp.eq.s32.totalorder %v77, 9
    %vm356 = vcmp.eq.s32.totalorder %v80, 9
    %vm357 = vcmp.eq.s32.totalorder %v83, 9
    %vm358 = vcmp.eq.s32.totalorder %v86, 9
    %vm359 = vcmp.eq.s32.totalorder %v89, 9
    %vm360 = vcmp.eq.s32.totalorder %v92, 9
    %vm361 = vcmp.eq.s32.totalorder %v95, 9
    %vm362 = vcmp.eq.s32.totalorder %v98, 9
    %v363 = vsel %vm355, %v354, 0.0
    %v364 = vsel %vm356, %v354, 0.0
    %v365 = vsel %vm357, %v354, 0.0
    %v366 = vsel %vm358, %v354, 0.0
    %v367 = vsel %vm359, %v354, 0.0
    %v368 = vsel %vm360, %v354, 0.0
    %v369 = vsel %vm361, %v354, 0.0
    %v370 = vsel %vm362, %v354, 0.0
    %v371 = vadd.f32 %v343, %v363
    %v372 = vadd.f32 %v344, %v364
    %v373 = vadd.f32 %v345, %v365
    %v374 = vadd.f32 %v346, %v366
    %v375 = vadd.f32 %v347, %v367
    %v376 = vadd.f32 %v348, %v368
    %v377 = vadd.f32 %v349, %v369
    %v378 = vadd.f32 %v350, %v370
    %v379 = vlaneseq
    %v380 = vshrl.u32 %v379, 7
    %v381 = vsub.s32 2, %v380
    %v382 = vrot.slane %v74, %v381
    %vm383 = vcmp.eq.s32.totalorder %v77, 10
    %vm384 = vcmp.eq.s32.totalorder %v80, 10
    %vm385 = vcmp.eq.s32.totalorder %v83, 10
    %vm386 = vcmp.eq.s32.totalorder %v86, 10
    %vm387 = vcmp.eq.s32.totalorder %v89, 10
    %vm388 = vcmp.eq.s32.totalorder %v92, 10
    %vm389 = vcmp.eq.s32.totalorder %v95, 10
    %vm390 = vcmp.eq.s32.totalorder %v98, 10
    %v391 = vsel %vm383, %v382, 0.0
    %v392 = vsel %vm384, %v382, 0.0
    %v393 = vsel %vm385, %v382, 0.0
    %v394 = vsel %vm386, %v382, 0.0
    %v395 = vsel %vm387, %v382, 0.0
    %v396 = vsel %vm388, %v382, 0.0
    %v397 = vsel %vm389, %v382, 0.0
    %v398 = vsel %vm390, %v382, 0.0
    %v399 = vadd.f32 %v371, %v391
    %v400 = vadd.f32 %v372, %v392
    %v401 = vadd.f32 %v373, %v393
    %v402 = vadd.f32 %v374, %v394
    %v403 = vadd.f32 %v375, %v395
    %v404 = vadd.f32 %v376, %v396
    %v405 = vadd.f32 %v377, %v397
    %v406 = vadd.f32 %v378, %v398
    %v407 = vlaneseq
    %v408 = vshrl.u32 %v407, 7
    %v409 = vsub.s32 3, %v408
    %v410 = vrot.slane %v74, %v409
    %vm411 = vcmp.eq.s32.totalorder %v77, 11
    %vm412 = vcmp.eq.s32.totalorder %v80, 11
    %vm413 = vcmp.eq.s32.totalorder %v83, 11
    %vm414 = vcmp.eq.s32.totalorder %v86, 11
    %vm415 = vcmp.eq.s32.totalorder %v89, 11
    %vm416 = vcmp.eq.s32.totalorder %v92, 11
    %vm417 = vcmp.eq.s32.totalorder %v95, 11
    %vm418 = vcmp.eq.s32.totalorder %v98, 11
    %v419 = vsel %vm411, %v410, 0.0
    %v420 = vsel %vm412, %v410, 0.0
    %v421 = vsel %vm413, %v410, 0.0
    %v422 = vsel %vm414, %v410, 0.0
    %v423 = vsel %vm415, %v410, 0.0
    %v424 = vsel %vm416, %v410, 0.0
    %v425 = vsel %vm417, %v410, 0.0
    %v426 = vsel %vm418, %v410, 0.0
    %v427 = vadd.f32 %v399, %v419
    %v428 = vadd.f32 %v400, %v420
    %v429 = vadd.f32 %v401, %v421
    %v430 = vadd.f32 %v402, %v422
    %v431 = vadd.f32 %v403, %v423
    %v432 = vadd.f32 %v404, %v424
    %v433 = vadd.f32 %v405, %v425
    %v434 = vadd.f32 %v406, %v426
    %v435 = vlaneseq
    %v436 = vshrl.u32 %v435, 7
    %v437 = vsub.s32 4, %v436
    %v438 = vrot.slane %v74, %v437
    %vm439 = vcmp.eq.s32.totalorder %v77, 12
    %vm440 = vcmp.eq.s32.totalorder %v80, 12
    %vm441 = vcmp.eq.s32.totalorder %v83, 12
    %vm442 = vcmp.eq.s32.totalorder %v86, 12
    %vm443 = vcmp.eq.s32.totalorder %v89, 12
    %vm444 = vcmp.eq.s32.totalorder %v92, 12
    %vm445 = vcmp.eq.s32.totalorder %v95, 12
    %vm446 = vcmp.eq.s32.totalorder %v98, 12
    %v447 = vsel %vm439, %v438, 0.0
    %v448 = vsel %vm440, %v438, 0.0
    %v449 = vsel %vm441, %v438, 0.0
    %v450 = vsel %vm442, %v438, 0.0
    %v451 = vsel %vm443, %v438, 0.0
    %v452 = vsel %vm444, %v438, 0.0
    %v453 = vsel %vm445, %v438, 0.0
    %v454 = vsel %vm446, %v438, 0.0
    %v455 = vadd.f32 %v427, %v447
    %v456 = vadd.f32 %v428, %v448
    %v457 = vadd.f32 %v429, %v449
    %v458 = vadd.f32 %v430, %v450
    %v459 = vadd.f32 %v431, %v451
    %v460 = vadd.f32 %v432, %v452
    %v461 = vadd.f32 %v433, %v453
    %v462 = vadd.f32 %v434, %v454
    %v463 = vlaneseq
    %v464 = vshrl.u32 %v463, 7
    %v465 = vsub.s32 5, %v464
    %v466 = vrot.slane %v74, %v465
    %vm467 = vcmp.eq.s32.totalorder %v77, 13
    %vm468 = vcmp.eq.s32.totalorder %v80, 13
    %vm469 = vcmp.eq.s32.totalorder %v83, 13
    %vm470 = vcmp.eq.s32.totalorder %v86, 13
    %vm471 = vcmp.eq.s32.totalorder %v89, 13
    %vm472 = vcmp.eq.s32.totalorder %v92, 13
    %vm473 = vcmp.eq.s32.totalorder %v95, 13
    %vm474 = vcmp.eq.s32.totalorder %v98, 13
    %v475 = vsel %vm467, %v466, 0.0
    %v476 = vsel %vm468, %v466, 0.0
    %v477 = vsel %vm469, %v466, 0.0
    %v478 = vsel %vm470, %v466, 0.0
    %v479 = vsel %vm471, %v466, 0.0
    %v480 = vsel %vm472, %v466, 0.0
    %v481 = vsel %vm473, %v466, 0.0
    %v482 = vsel %vm474, %v466, 0.0
    %v483 = vadd.f32 %v455, %v475
    %v484 = vadd.f32 %v456, %v476
    %v485 = vadd.f32 %v457, %v477
    %v486 = vadd.f32 %v458, %v478
    %v487 = vadd.f32 %v459, %v479
    %v488 = vadd.f32 %v460, %v480
    %v489 = vadd.f32 %v461, %v481
    %v490 = vadd.f32 %v462, %v482
    %v491 = vlaneseq
    %v492 = vshrl.u32 %v491, 7
    %v493 = vsub.s32 6, %v492
    %v494 = vrot.slane %v74, %v493
    %vm495 = vcmp.eq.s32.totalorder %v77, 14
    %vm496 = vcmp.eq.s32.totalorder %v80, 14
    %vm497 = vcmp.eq.s32.totalorder %v83, 14
    %vm498 = vcmp.eq.s32.totalorder %v86, 14
    %vm499 = vcmp.eq.s32.totalorder %v89, 14
    %vm500 = vcmp.eq.s32.totalorder %v92, 14
    %vm501 = vcmp.eq.s32.totalorder %v95, 14
    %vm502 = vcmp.eq.s32.totalorder %v98, 14
    %v503 = vsel %vm495, %v494, 0.0
    %v504 = vsel %vm496, %v494, 0.0
    %v505 = vsel %vm497, %v494, 0.0
    %v506 = vsel %vm498, %v494, 0.0
    %v507 = vsel %vm499, %v494, 0.0
    %v508 = vsel %vm500, %v494, 0.0
    %v509 = vsel %vm501, %v494, 0.0
    %v510 = vsel %vm502, %v494, 0.0
    %v511 = vadd.f32 %v483, %v503
    %v512 = vadd.f32 %v484, %v504
    %v513 = vadd.f32 %v485, %v505
    %v514 = vadd.f32 %v486, %v506
    %v515 = vadd.f32 %v487, %v507
    %v516 = vadd.f32 %v488, %v508
    %v517 = vadd.f32 %v489, %v509
    %v518 = vadd.f32 %v490, %v510
    %v519 = vlaneseq
    %v520 = vshrl.u32 %v519, 7
    %v521 = vsub.s32 7, %v520
    %v522 = vrot.slane %v74, %v521
    %vm523 = vcmp.eq.s32.totalorder %v77, 15
    %vm524 = vcmp.eq.s32.totalorder %v80, 15
    %vm525 = vcmp.eq.s32.totalorder %v83, 15
    %vm526 = vcmp.eq.s32.totalorder %v86, 15
    %vm527 = vcmp.eq.s32.totalorder %v89, 15
    %vm528 = vcmp.eq.s32.totalorder %v92, 15
    %vm529 = vcmp.eq.s32.totalorder %v95, 15
    %vm530 = vcmp.eq.s32.totalorder %v98, 15
    %v531 = vsel %vm523, %v522, 0.0
    %v532 = vsel %vm524, %v522, 0.0
    %v533 = vsel %vm525, %v522, 0.0
    %v534 = vsel %vm526, %v522, 0.0
    %v535 = vsel %vm527, %v522, 0.0
    %v536 = vsel %vm528, %v522, 0.0
    %v537 = vsel %vm529, %v522, 0.0
    %v538 = vsel %vm530, %v522, 0.0
    %v539 = vadd.f32 %v511, %v531
    %v540 = vadd.f32 %v512, %v532
    %v541 = vadd.f32 %v513, %v533
    %v542 = vadd.f32 %v514, %v534
    %v543 = vadd.f32 %v515, %v535
    %v544 = vadd.f32 %v516, %v536
    %v545 = vadd.f32 %v517, %v537
    %v546 = vadd.f32 %v518, %v538
    %v547 = vld [vmem:[#allocation2] sm:$0xff]
    %v548 = vld [vmem:[#allocation2 + $0x8] sm:$0xff]
    %v549 = vld [vmem:[#allocation2 + $0x10] sm:$0xff]
    %v550 = vld [vmem:[#allocation2 + $0x18] sm:$0xff]
    %v551 = vld [vmem:[#allocation2 + $0x20] sm:$0xff]
    %v552 = vld [vmem:[#allocation2 + $0x28] sm:$0xff]
    %v553 = vld [vmem:[#allocation2 + $0x30] sm:$0xff]
    %v554 = vld [vmem:[#allocation2 + $0x38] sm:$0xff]
    %v555 = vld [vmem:[#allocation2 + $0x40] sm:$0xff]
    %v556 = vld [vmem:[#allocation2 + $0x48] sm:$0xff]
    %v557 = vld [vmem:[#allocation2 + $0x50] sm:$0xff]
    %v558 = vld [vmem:[#allocation2 + $0x58] sm:$0xff]
    %v559 = vld [vmem:[#allocation2 + $0x60] sm:$0xff]
    %v560 = vld [vmem:[#allocation2 + $0x68] sm:$0xff]
    %v561 = vld [vmem:[#allocation2 + $0x70] sm:$0xff]
    %v562 = vld [vmem:[#allocation2 + $0x78] sm:$0xff]
    %v563 = vld [vmem:[%s4] sm:$0x1]
    %v565 = vlaneseq
    %v566 = vshrl.u32 %v565, 7
    %v567 = vsub.s32 0, %v566
    %v568 = vrot.slane %v563, %v567
    %570 = vmatprep.subr.mxu0 0.0
    %571 = vmatpush1.msra.mxu0 %v547
    %572 = vmatprep.subr.mxu0 0.0
    %573 = vmatpush1.msra.mxu0 %v548
    %574 = vmatprep.subr.mxu0 0.0
    %575 = vmatpush1.msra.mxu0 %v549
    %576 = vmatprep.subr.mxu0 0.0
    %577 = vmatpush1.msra.mxu0 %v550
    %578 = vmatprep.subr.mxu0 0.0
    %579 = vmatpush1.msra.mxu0 %v551
    %580 = vmatprep.subr.mxu0 0.0
    %581 = vmatpush1.msra.mxu0 %v552
    %582 = vmatprep.subr.mxu0 0.0
    %583 = vmatpush1.msra.mxu0 %v553
    %584 = vmatprep.subr.mxu0 0.0
    %585 = vmatpush1.msra.mxu0 %v554
    %586 = vmatprep.subr.mxu0 0.0
    %587 = vmatpush1.msra.mxu0 %v555
    %588 = vmatprep.subr.mxu0 0.0
    %589 = vmatpush1.msra.mxu0 %v556
    %590 = vmatprep.subr.mxu0 0.0
    %591 = vmatpush1.msra.mxu0 %v557
    %592 = vmatprep.subr.mxu0 0.0
    %593 = vmatpush1.msra.mxu0 %v558
    %594 = vmatprep.subr.mxu0 0.0
    %595 = vmatpush1.msra.mxu0 %v559
    %596 = vmatprep.subr.mxu0 0.0
    %597 = vmatpush1.msra.mxu0 %v560
    %598 = vmatprep.subr.mxu0 0.0
    %599 = vmatpush1.msra.mxu0 %v561
    %600 = vmatprep.subr.mxu0 0.0
    %601 = vmatpush1.msra.mxu0 %v562
    %602 = vmatprep.subr.mxu0 0.0
    %603 = vmatpush1.msra.mxu0 0.0
    %604 = vmatprep.subr.mxu0 0.0
    %605 = vmatpush1.msra.mxu0 0.0
    %606 = vmatprep.subr.mxu0 0.0
    %607 = vmatpush1.msra.mxu0 0.0
    %608 = vmatprep.subr.mxu0 0.0
    %609 = vmatpush1.msra.mxu0 0.0
    %610 = vmatprep.subr.mxu0 0.0
    %611 = vmatpush1.msra.mxu0 0.0
    %612 = vmatprep.subr.mxu0 0.0
    %613 = vmatpush1.msra.mxu0 0.0
    %614 = vmatprep.subr.mxu0 0.0
    %615 = vmatpush1.msra.mxu0 0.0
    %616 = vmatprep.subr.mxu0 0.0
    %617 = vmatpush1.msra.mxu0 0.0
    %618 = vmatprep.subr.mxu0 0.0
    %619 = vmatpush1.msra.mxu0 0.0
    %620 = vmatprep.subr.mxu0 0.0
    %621 = vmatpush1.msra.mxu0 0.0
    %622 = vmatprep.subr.mxu0 0.0
    %623 = vmatpush1.msra.mxu0 0.0
    %624 = vmatprep.subr.mxu0 0.0
    %625 = vmatpush1.msra.mxu0 0.0
    %626 = vmatprep.subr.mxu0 0.0
    %627 = vmatpush1.msra.mxu0 0.0
    %628 = vmatprep.subr.mxu0 0.0
    %629 = vmatpush1.msra.mxu0 0.0
    %630 = vmatprep.subr.mxu0 0.0
    %631 = vmatpush1.msra.mxu0 0.0
    %632 = vmatprep.subr.mxu0 0.0
    %633 = vmatpush1.msra.mxu0 0.0
    %634 = vmatprep.mubr.f32.mxu0 0.0
    %635 = vmatmul.mubr.f32.gmra.mrb[0].mxu0 %v539
    %v636 = vpop.f32.mrb[0].mxu0
    %v637 = vadd.f32 %v568, %v636
    %v638 = vpop.f32.mrb[0].mxu0
    %639 = vmatprep.mubr.f32.mxu0 0.0
    %640 = vmatmul.mubr.f32.gmra.mrb[0].mxu0 %v540
    %v641 = vpop.f32.mrb[0].mxu0
    %v642 = vadd.f32 %v568, %v641
    %v643 = vpop.f32.mrb[0].mxu0
    %644 = vmatprep.mubr.f32.mxu0 0.0
    %645 = vmatmul.mubr.f32.gmra.mrb[0].mxu0 %v541
    %v646 = vpop.f32.mrb[0].mxu0
    %v647 = vadd.f32 %v568, %v646
    %v648 = vpop.f32.mrb[0].mxu0
    %649 = vmatprep.mubr.f32.mxu0 0.0
    %650 = vmatmul.mubr.f32.gmra.mrb[0].mxu0 %v542
    %v651 = vpop.f32.mrb[0].mxu0
    %v652 = vadd.f32 %v568, %v651
    %v653 = vpop.f32.mrb[0].mxu0
    %654 = vmatprep.mubr.f32.mxu0 0.0
    %655 = vmatmul.mubr.f32.gmra.mrb[0].mxu0 %v543
    %v656 = vpop.f32.mrb[0].mxu0
    %v657 = vadd.f32 %v568, %v656
    %v658 = vpop.f32.mrb[0].mxu0
    %659 = vmatprep.mubr.f32.mxu0 0.0
    %660 = vmatmul.mubr.f32.gmra.mrb[0].mxu0 %v544
    %v661 = vpop.f32.mrb[0].mxu0
    %v662 = vadd.f32 %v568, %v661
    %v663 = vpop.f32.mrb[0].mxu0
    %664 = vmatprep.mubr.f32.mxu0 0.0
    %665 = vmatmul.mubr.f32.gmra.mrb[0].mxu0 %v545
    %v666 = vpop.f32.mrb[0].mxu0
    %v667 = vadd.f32 %v568, %v666
    %v668 = vpop.f32.mrb[0].mxu0
    %669 = vmatprep.mubr.f32.mxu0 0.0
    %670 = vmatmul.mubr.f32.gmra.mrb[0].mxu0 %v546
    %v671 = vpop.f32.mrb[0].mxu0
    %v672 = vadd.f32 %v568, %v671
    %v673 = vpop.f32.mrb[0].mxu0
    %674 = vdwg.mxu0
    %v675 = vld [vmem:[#allocation5] sm:$0xff]
    %v676 = vld [vmem:[#allocation5 + $0x8] sm:$0xff]
    %v677 = vld [vmem:[#allocation5 + $0x10] sm:$0xff]
    %v678 = vld [vmem:[#allocation5 + $0x18] sm:$0xff]
    %v679 = vld [vmem:[#allocation5 + $0x20] sm:$0xff]
    %v680 = vld [vmem:[#allocation5 + $0x28] sm:$0xff]
    %v681 = vld [vmem:[#allocation5 + $0x30] sm:$0xff]
    %v682 = vld [vmem:[#allocation5 + $0x38] sm:$0xff]
    %v683 = vld [vmem:[#allocation5 + $0x40] sm:$0xff]
    %v684 = vld [vmem:[#allocation5 + $0x48] sm:$0xff]
    %v685 = vld [vmem:[#allocation5 + $0x50] sm:$0xff]
    %v686 = vld [vmem:[#allocation5 + $0x58] sm:$0xff]
    %v687 = vld [vmem:[#allocation5 + $0x60] sm:$0xff]
    %v688 = vld [vmem:[#allocation5 + $0x68] sm:$0xff]
    %v689 = vld [vmem:[#allocation5 + $0x70] sm:$0xff]
    %v690 = vld [vmem:[#allocation5 + $0x78] sm:$0xff]
    %691 = vmatprep.subr.mxu0 0.0
    %692 = vmatpush1.msra.mxu0 %v675
    %693 = vmatprep.subr.mxu0 0.0
    %694 = vmatpush1.msra.mxu0 %v676
    %695 = vmatprep.subr.mxu0 0.0
    %696 = vmatpush1.msra.mxu0 %v677
    %697 = vmatprep.subr.mxu0 0.0
    %698 = vmatpush1.msra.mxu0 %v678
    %699 = vmatprep.subr.mxu0 0.0
    %700 = vmatpush1.msra.mxu0 %v679
    %701 = vmatprep.subr.mxu0 0.0
    %702 = vmatpush1.msra.mxu0 %v680
    %703 = vmatprep.subr.mxu0 0.0
    %704 = vmatpush1.msra.mxu0 %v681
    %705 = vmatprep.subr.mxu0 0.0
    %706 = vmatpush1.msra.mxu0 %v682
    %707 = vmatprep.subr.mxu0 0.0
    %708 = vmatpush1.msra.mxu0 %v683
    %709 = vmatprep.subr.mxu0 0.0
    %710 = vmatpush1.msra.mxu0 %v684
    %711 = vmatprep.subr.mxu0 0.0
    %712 = vmatpush1.msra.mxu0 %v685
    %713 = vmatprep.subr.mxu0 0.0
    %714 = vmatpush1.msra.mxu0 %v686
    %715 = vmatprep.subr.mxu0 0.0
    %716 = vmatpush1.msra.mxu0 %v687
    %717 = vmatprep.subr.mxu0 0.0
    %718 = vmatpush1.msra.mxu0 %v688
    %719 = vmatprep.subr.mxu0 0.0
    %720 = vmatpush1.msra.mxu0 %v689
    %721 = vmatprep.subr.mxu0 0.0
    %722 = vmatpush1.msra.mxu0 %v690
    %723 = vmatprep.subr.mxu0 0.0
    %724 = vmatpush1.msra.mxu0 0.0
    %725 = vmatprep.subr.mxu0 0.0
    %726 = vmatpush1.msra.mxu0 0.0
    %727 = vmatprep.subr.mxu0 0.0
    %728 = vmatpush1.msra.mxu0 0.0
    %729 = vmatprep.subr.mxu0 0.0
    %730 = vmatpush1.msra.mxu0 0.0
    %731 = vmatprep.subr.mxu0 0.0
    %732 = vmatpush1.msra.mxu0 0.0
    %733 = vmatprep.subr.mxu0 0.0
    %734 = vmatpush1.msra.mxu0 0.0
    %735 = vmatprep.subr.mxu0 0.0
    %736 = vmatpush1.msra.mxu0 0.0
    %737 = vmatprep.subr.mxu0 0.0
    %738 = vmatpush1.msra.mxu0 0.0
    %739 = vmatprep.subr.mxu0 0.0
    %740 = vmatpush1.msra.mxu0 0.0
    %741 = vmatprep.subr.mxu0 0.0
    %742 = vmatpush1.msra.mxu0 0.0
    %743 = vmatprep.subr.mxu0 0.0
    %744 = vmatpush1.msra.mxu0 0.0
    %745 = vmatprep.subr.mxu0 0.0
    %746 = vmatpush1.msra.mxu0 0.0
    %747 = vmatprep.subr.mxu0 0.0
    %748 = vmatpush1.msra.mxu0 0.0
    %749 = vmatprep.subr.mxu0 0.0
    %750 = vmatpush1.msra.mxu0 0.0
    %751 = vmatprep.subr.mxu0 0.0
    %752 = vmatpush1.msra.mxu0 0.0
    %753 = vmatprep.subr.mxu0 0.0
    %754 = vmatpush1.msra.mxu0 0.0
    %755 = vmatprep.mubr.f32.mxu0 0.0
    %756 = vmatmul.mubr.f32.gmra.mrb[0].mxu0 0.0
    %v757 = vpop.f32.mrb[0].mxu0
    %v758 = vadd.f32 0.0, %v757
    %v759 = vpop.f32.mrb[0].mxu0
    %760 = vdwg.mxu0
    %v761 = vadd.f32 %v637, %v758
    %v762 = vtanh.pop %v761
    %763 = vmatprep.subr.mxu0 0.0
    %764 = vmatpush1.msra.mxu0 %v675
    %765 = vmatprep.subr.mxu0 0.0
    %766 = vmatpush1.msra.mxu0 %v676
    %767 = vmatprep.subr.mxu0 0.0
    %768 = vmatpush1.msra.mxu0 %v677
    %769 = vmatprep.subr.mxu0 0.0
    %770 = vmatpush1.msra.mxu0 %v678
    %771 = vmatprep.subr.mxu0 0.0
    %772 = vmatpush1.msra.mxu0 %v679
    %773 = vmatprep.subr.mxu0 0.0
    %774 = vmatpush1.msra.mxu0 %v680
    %775 = vmatprep.subr.mxu0 0.0
    %776 = vmatpush1.msra.mxu0 %v681
    %777 = vmatprep.subr.mxu0 0.0
    %778 = vmatpush1.msra.mxu0 %v682
    %779 = vmatprep.subr.mxu0 0.0
    %780 = vmatpush1.msra.mxu0 %v683
    %781 = vmatprep.subr.mxu0 0.0
    %782 = vmatpush1.msra.mxu0 %v684
    %783 = vmatprep.subr.mxu0 0.0
    %784 = vmatpush1.msra.mxu0 %v685
    %785 = vmatprep.subr.mxu0 0.0
    %786 = vmatpush1.msra.mxu0 %v686
    %787 = vmatprep.subr.mxu0 0.0
    %788 = vmatpush1.msra.mxu0 %v687
    %789 = vmatprep.subr.mxu0 0.0
    %790 = vmatpush1.msra.mxu0 %v688
    %791 = vmatprep.subr.mxu0 0.0
    %792 = vmatpush1.msra.mxu0 %v689
    %793 = vmatprep.subr.mxu0 0.0
    %794 = vmatpush1.msra.mxu0 %v690
    %795 = vmatprep.subr.mxu0 0.0
    %796 = vmatpush1.msra.mxu0 0.0
    %797 = vmatprep.subr.mxu0 0.0
    %798 = vmatpush1.msra.mxu0 0.0
    %799 = vmatprep.subr.mxu0 0.0
    %800 = vmatpush1.msra.mxu0 0.0
    %801 = vmatprep.subr.mxu0 0.0
    %802 = vmatpush1.msra.mxu0 0.0
    %803 = vmatprep.subr.mxu0 0.0
    %804 = vmatpush1.msra.mxu0 0.0
    %805 = vmatprep.subr.mxu0 0.0
    %806 = vmatpush1.msra.mxu0 0.0
    %807 = vmatprep.subr.mxu0 0.0
    %808 = vmatpush1.msra.mxu0 0.0
    %809 = vmatprep.subr.mxu0 0.0
    %810 = vmatpush1.msra.mxu0 0.0
    %811 = vmatprep.subr.mxu0 0.0
    %812 = vmatpush1.msra.mxu0 0.0
    %813 = vmatprep.subr.mxu0 0.0
    %814 = vmatpush1.msra.mxu0 0.0
    %815 = vmatprep.subr.mxu0 0.0
    %816 = vmatpush1.msra.mxu0 0.0
    %817 = vmatprep.subr.mxu0 0.0
    %818 = vmatpush1.msra.mxu0 0.0
    %819 = vmatprep.subr.mxu0 0.0
    %820 = vmatpush1.msra.mxu0 0.0
    %821 = vmatprep.subr.mxu0 0.0
    %822 = vmatpush1.msra.mxu0 0.0
    %823 = vmatprep.subr.mxu0 0.0
    %824 = vmatpush1.msra.mxu0 0.0
    %825 = vmatprep.subr.mxu0 0.0
    %826 = vmatpush1.msra.mxu0 0.0
    %827 = vmatprep.mubr.f32.mxu0 0.0
    %828 = vmatmul.mubr.f32.gmra.mrb[0].mxu0 %v762
    %v829 = vpop.f32.mrb[0].mxu0
    %v830 = vadd.f32 0.0, %v829
    %v831 = vpop.f32.mrb[0].mxu0
    %832 = vdwg.mxu0
    %v833 = vadd.f32 %v642, %v830
    %v834 = vtanh.pop %v833
    %835 = vmatprep.subr.mxu0 0.0
    %836 = vmatpush1.msra.mxu0 %v675
    %837 = vmatprep.subr.mxu0 0.0
    %838 = vmatpush1.msra.mxu0 %v676
    %839 = vmatprep.subr.mxu0 0.0
    %840 = vmatpush1.msra.mxu0 %v677
    %841 = vmatprep.subr.mxu0 0.0
    %842 = vmatpush1.msra.mxu0 %v678
    %843 = vmatprep.subr.mxu0 0.0
    %844 = vmatpush1.msra.mxu0 %v679
    %845 = vmatprep.subr.mxu0 0.0
    %846 = vmatpush1.msra.mxu0 %v680
    %847 = vmatprep.subr.mxu0 0.0
    %848 = vmatpush1.msra.mxu0 %v681
    %849 = vmatprep.subr.mxu0 0.0
    %850 = vmatpush1.msra.mxu0 %v682
    %851 = vmatprep.subr.mxu0 0.0
    %852 = vmatpush1.msra.mxu0 %v683
    %853 = vmatprep.subr.mxu0 0.0
    %854 = vmatpush1.msra.mxu0 %v684
    %855 = vmatprep.subr.mxu0 0.0
    %856 = vmatpush1.msra.mxu0 %v685
    %857 = vmatprep.subr.mxu0 0.0
    %858 = vmatpush1.msra.mxu0 %v686
    %859 = vmatprep.subr.mxu0 0.0
    %860 = vmatpush1.msra.mxu0 %v687
    %861 = vmatprep.subr.mxu0 0.0
    %862 = vmatpush1.msra.mxu0 %v688
    %863 = vmatprep.subr.mxu0 0.0
    %864 = vmatpush1.msra.mxu0 %v689
    %865 = vmatprep.subr.mxu0 0.0
    %866 = vmatpush1.msra.mxu0 %v690
    %867 = vmatprep.subr.mxu0 0.0
    %868 = vmatpush1.msra.mxu0 0.0
    %869 = vmatprep.subr.mxu0 0.0
    %870 = vmatpush1.msra.mxu0 0.0
    %871 = vmatprep.subr.mxu0 0.0
    %872 = vmatpush1.msra.mxu0 0.0
    %873 = vmatprep.subr.mxu0 0.0
    %874 = vmatpush1.msra.mxu0 0.0
    %875 = vmatprep.subr.mxu0 0.0
    %876 = vmatpush1.msra.mxu0 0.0
    %877 = vmatprep.subr.mxu0 0.0
    %878 = vmatpush1.msra.mxu0 0.0
    %879 = vmatprep.subr.mxu0 0.0
    %880 = vmatpush1.msra.mxu0 0.0
    %881 = vmatprep.subr.mxu0 0.0
    %882 = vmatpush1.msra.mxu0 0.0
    %883 = vmatprep.subr.mxu0 0.0
    %884 = vmatpush1.msra.mxu0 0.0
    %885 = vmatprep.subr.mxu0 0.0
    %886 = vmatpush1.msra.mxu0 0.0
    %887 = vmatprep.subr.mxu0 0.0
    %888 = vmatpush1.msra.mxu0 0.0
    %889 = vmatprep.subr.mxu0 0.0
    %890 = vmatpush1.msra.mxu0 0.0
    %891 = vmatprep.subr.mxu0 0.0
    %892 = vmatpush1.msra.mxu0 0.0
    %893 = vmatprep.subr.mxu0 0.0
    %894 = vmatpush1.msra.mxu0 0.0
    %895 = vmatprep.subr.mxu0 0.0
    %896 = vmatpush1.msra.mxu0 0.0
    %897 = vmatprep.subr.mxu0 0.0
    %898 = vmatpush1.msra.mxu0 0.0
    %899 = vmatprep.mubr.f32.mxu0 0.0
    %900 = vmatmul.mubr.f32.gmra.mrb[0].mxu0 %v834
    %v901 = vpop.f32.mrb[0].mxu0
    %v902 = vadd.f32 0.0, %v901
    %v903 = vpop.f32.mrb[0].mxu0
    %904 = vdwg.mxu0
    %v905 = vadd.f32 %v647, %v902
    %v906 = vtanh.pop %v905
    %907 = vmatprep.subr.mxu0 0.0
    %908 = vmatpush1.msra.mxu0 %v675
    %909 = vmatprep.subr.mxu0 0.0
    %910 = vmatpush1.msra.mxu0 %v676
    %911 = vmatprep.subr.mxu0 0.0
    %912 = vmatpush1.msra.mxu0 %v677
    %913 = vmatprep.subr.mxu0 0.0
    %914 = vmatpush1.msra.mxu0 %v678
    %915 = vmatprep.subr.mxu0 0.0
    %916 = vmatpush1.msra.mxu0 %v679
    %917 = vmatprep.subr.mxu0 0.0
    %918 = vmatpush1.msra.mxu0 %v680
    %919 = vmatprep.subr.mxu0 0.0
    %920 = vmatpush1.msra.mxu0 %v681
    %921 = vmatprep.subr.mxu0 0.0
    %922 = vmatpush1.msra.mxu0 %v682
    %923 = vmatprep.subr.mxu0 0.0
    %924 = vmatpush1.msra.mxu0 %v683
    %925 = vmatprep.subr.mxu0 0.0
    %926 = vmatpush1.msra.mxu0 %v684
    %927 = vmatprep.subr.mxu0 0.0
    %928 = vmatpush1.msra.mxu0 %v685
    %929 = vmatprep.subr.mxu0 0.0
    %930 = vmatpush1.msra.mxu0 %v686
    %931 = vmatprep.subr.mxu0 0.0
    %932 = vmatpush1.msra.mxu0 %v687
    %933 = vmatprep.subr.mxu0 0.0
    %934 = vmatpush1.msra.mxu0 %v688
    %935 = vmatprep.subr.mxu0 0.0
    %936 = vmatpush1.msra.mxu0 %v689
    %937 = vmatprep.subr.mxu0 0.0
    %938 = vmatpush1.msra.mxu0 %v690
    %939 = vmatprep.subr.mxu0 0.0
    %940 = vmatpush1.msra.mxu0 0.0
    %941 = vmatprep.subr.mxu0 0.0
    %942 = vmatpush1.msra.mxu0 0.0
    %943 = vmatprep.subr.mxu0 0.0
    %944 = vmatpush1.msra.mxu0 0.0
    %945 = vmatprep.subr.mxu0 0.0
    %946 = vmatpush1.msra.mxu0 0.0
    %947 = vmatprep.subr.mxu0 0.0
    %948 = vmatpush1.msra.mxu0 0.0
    %949 = vmatprep.subr.mxu0 0.0
    %950 = vmatpush1.msra.mxu0 0.0
    %951 = vmatprep.subr.mxu0 0.0
    %952 = vmatpush1.msra.mxu0 0.0
    %953 = vmatprep.subr.mxu0 0.0
    %954 = vmatpush1.msra.mxu0 0.0
    %955 = vmatprep.subr.mxu0 0.0
    %956 = vmatpush1.msra.mxu0 0.0
    %957 = vmatprep.subr.mxu0 0.0
    %958 = vmatpush1.msra.mxu0 0.0
    %959 = vmatprep.subr.mxu0 0.0
    %960 = vmatpush1.msra.mxu0 0.0
    %961 = vmatprep.subr.mxu0 0.0
    %962 = vmatpush1.msra.mxu0 0.0
    %963 = vmatprep.subr.mxu0 0.0
    %964 = vmatpush1.msra.mxu0 0.0
    %965 = vmatprep.subr.mxu0 0.0
    %966 = vmatpush1.msra.mxu0 0.0
    %967 = vmatprep.subr.mxu0 0.0
    %968 = vmatpush1.msra.mxu0 0.0
    %969 = vmatprep.subr.mxu0 0.0
    %970 = vmatpush1.msra.mxu0 0.0
    %971 = vmatprep.mubr.f32.mxu0 0.0
    %972 = vmatmul.mubr.f32.gmra.mrb[0].mxu0 %v906
    %v973 = vpop.f32.mrb[0].mxu0
    %v974 = vadd.f32 0.0, %v973
    %v975 = vpop.f32.mrb[0].mxu0
    %976 = vdwg.mxu0
    %v977 = vadd.f32 %v652, %v974
    %v978 = vtanh.pop %v977
    %979 = vmatprep.subr.mxu0 0.0
    %980 = vmatpush1.msra.mxu0 %v675
    %981 = vmatprep.subr.mxu0 0.0
    %982 = vmatpush1.msra.mxu0 %v676
    %983 = vmatprep.subr.mxu0 0.0
    %984 = vmatpush1.msra.mxu0 %v677
    %985 = vmatprep.subr.mxu0 0.0
    %986 = vmatpush1.msra.mxu0 %v678
    %987 = vmatprep.subr.mxu0 0.0
    %988 = vmatpush1.msra.mxu0 %v679
    %989 = vmatprep.subr.mxu0 0.0
    %990 = vmatpush1.msra.mxu0 %v680
    %991 = vmatprep.subr.mxu0 0.0
    %992 = vmatpush1.msra.mxu0 %v681
    %993 = vmatprep.subr.mxu0 0.0
    %994 = vmatpush1.msra.mxu0 %v682
    %995 = vmatprep.subr.mxu0 0.0
    %996 = vmatpush1.msra.mxu0 %v683
    %997 = vmatprep.subr.mxu0 0.0
    %998 = vmatpush1.msra.mxu0 %v684
    %999 = vmatprep.subr.mxu0 0.0
    %1000 = vmatpush1.msra.mxu0 %v685
    %1001 = vmatprep.subr.mxu0 0.0
    %1002 = vmatpush1.msra.mxu0 %v686
    %1003 = vmatprep.subr.mxu0 0.0
    %1004 = vmatpush1.msra.mxu0 %v687
    %1005 = vmatprep.subr.mxu0 0.0
    %1006 = vmatpush1.msra.mxu0 %v688
    %1007 = vmatprep.subr.mxu0 0.0
    %1008 = vmatpush1.msra.mxu0 %v689
    %1009 = vmatprep.subr.mxu0 0.0
    %1010 = vmatpush1.msra.mxu0 %v690
    %1011 = vmatprep.subr.mxu0 0.0
    %1012 = vmatpush1.msra.mxu0 0.0
    %1013 = vmatprep.subr.mxu0 0.0
    %1014 = vmatpush1.msra.mxu0 0.0
    %1015 = vmatprep.subr.mxu0 0.0
    %1016 = vmatpush1.msra.mxu0 0.0
    %1017 = vmatprep.subr.mxu0 0.0
    %1018 = vmatpush1.msra.mxu0 0.0
    %1019 = vmatprep.subr.mxu0 0.0
    %1020 = vmatpush1.msra.mxu0 0.0
    %1021 = vmatprep.subr.mxu0 0.0
    %1022 = vmatpush1.msra.mxu0 0.0
    %1023 = vmatprep.subr.mxu0 0.0
    %1024 = vmatpush1.msra.mxu0 0.0
    %1025 = vmatprep.subr.mxu0 0.0
    %1026 = vmatpush1.msra.mxu0 0.0
    %1027 = vmatprep.subr.mxu0 0.0
    %1028 = vmatpush1.msra.mxu0 0.0
    %1029 = vmatprep.subr.mxu0 0.0
    %1030 = vmatpush1.msra.mxu0 0.0
    %1031 = vmatprep.subr.mxu0 0.0
    %1032 = vmatpush1.msra.mxu0 0.0
    %1033 = vmatprep.subr.mxu0 0.0
    %1034 = vmatpush1.msra.mxu0 0.0
    %1035 = vmatprep.subr.mxu0 0.0
    %1036 = vmatpush1.msra.mxu0 0.0
    %1037 = vmatprep.subr.mxu0 0.0
    %1038 = vmatpush1.msra.mxu0 0.0
    %1039 = vmatprep.subr.mxu0 0.0
    %1040 = vmatpush1.msra.mxu0 0.0
    %1041 = vmatprep.subr.mxu0 0.0
    %1042 = vmatpush1.msra.mxu0 0.0
    %1043 = vmatprep.mubr.f32.mxu0 0.0
    %1044 = vmatmul.mubr.f32.gmra.mrb[0].mxu0 %v978
    %v1045 = vpop.f32.mrb[0].mxu0
    %v1046 = vadd.f32 0.0, %v1045
    %v1047 = vpop.f32.mrb[0].mxu0
    %1048 = vdwg.mxu0
    %v1049 = vadd.f32 %v657, %v1046
    %v1050 = vtanh.pop %v1049
    %1051 = vmatprep.subr.mxu0 0.0
    %1052 = vmatpush1.msra.mxu0 %v675
    %1053 = vmatprep.subr.mxu0 0.0
    %1054 = vmatpush1.msra.mxu0 %v676
    %1055 = vmatprep.subr.mxu0 0.0
    %1056 = vmatpush1.msra.mxu0 %v677
    %1057 = vmatprep.subr.mxu0 0.0
    %1058 = vmatpush1.msra.mxu0 %v678
    %1059 = vmatprep.subr.mxu0 0.0
    %1060 = vmatpush1.msra.mxu0 %v679
    %1061 = vmatprep.subr.mxu0 0.0
    %1062 = vmatpush1.msra.mxu0 %v680
    %1063 = vmatprep.subr.mxu0 0.0
    %1064 = vmatpush1.msra.mxu0 %v681
    %1065 = vmatprep.subr.mxu0 0.0
    %1066 = vmatpush1.msra.mxu0 %v682
    %1067 = vmatprep.subr.mxu0 0.0
    %1068 = vmatpush1.msra.mxu0 %v683
    %1069 = vmatprep.subr.mxu0 0.0
    %1070 = vmatpush1.msra.mxu0 %v684
    %1071 = vmatprep.subr.mxu0 0.0
    %1072 = vmatpush1.msra.mxu0 %v685
    %1073 = vmatprep.subr.mxu0 0.0
    %1074 = vmatpush1.msra.mxu0 %v686
    %1075 = vmatprep.subr.mxu0 0.0
    %1076 = vmatpush1.msra.mxu0 %v687
    %1077 = vmatprep.subr.mxu0 0.0
    %1078 = vmatpush1.msra.mxu0 %v688
    %1079 = vmatprep.subr.mxu0 0.0
    %1080 = vmatpush1.msra.mxu0 %v689
    %1081 = vmatprep.subr.mxu0 0.0
    %1082 = vmatpush1.msra.mxu0 %v690
    %1083 = vmatprep.subr.mxu0 0.0
    %1084 = vmatpush1.msra.mxu0 0.0
    %1085 = vmatprep.subr.mxu0 0.0
    %1086 = vmatpush1.msra.mxu0 0.0
    %1087 = vmatprep.subr.mxu0 0.0
    %1088 = vmatpush1.msra.mxu0 0.0
    %1089 = vmatprep.subr.mxu0 0.0
    %1090 = vmatpush1.msra.mxu0 0.0
    %1091 = vmatprep.subr.mxu0 0.0
    %1092 = vmatpush1.msra.mxu0 0.0
    %1093 = vmatprep.subr.mxu0 0.0
    %1094 = vmatpush1.msra.mxu0 0.0
    %1095 = vmatprep.subr.mxu0 0.0
    %1096 = vmatpush1.msra.mxu0 0.0
    %1097 = vmatprep.subr.mxu0 0.0
    %1098 = vmatpush1.msra.mxu0 0.0
    %1099 = vmatprep.subr.mxu0 0.0
    %1100 = vmatpush1.msra.mxu0 0.0
    %1101 = vmatprep.subr.mxu0 0.0
    %1102 = vmatpush1.msra.mxu0 0.0
    %1103 = vmatprep.subr.mxu0 0.0
    %1104 = vmatpush1.msra.mxu0 0.0
    %1105 = vmatprep.subr.mxu0 0.0
    %1106 = vmatpush1.msra.mxu0 0.0
    %1107 = vmatprep.subr.mxu0 0.0
    %1108 = vmatpush1.msra.mxu0 0.0
    %1109 = vmatprep.subr.mxu0 0.0
    %1110 = vmatpush1.msra.mxu0 0.0
    %1111 = vmatprep.subr.mxu0 0.0
    %1112 = vmatpush1.msra.mxu0 0.0
    %1113 = vmatprep.subr.mxu0 0.0
    %1114 = vmatpush1.msra.mxu0 0.0
    %1115 = vmatprep.mubr.f32.mxu0 0.0
    %1116 = vmatmul.mubr.f32.gmra.mrb[0].mxu0 %v1050
    %v1117 = vpop.f32.mrb[0].mxu0
    %v1118 = vadd.f32 0.0, %v1117
    %v1119 = vpop.f32.mrb[0].mxu0
    %1120 = vdwg.mxu0
    %v1121 = vadd.f32 %v662, %v1118
    %v1122 = vtanh.pop %v1121
    %1123 = vmatprep.subr.mxu0 0.0
    %1124 = vmatpush1.msra.mxu0 %v675
    %1125 = vmatprep.subr.mxu0 0.0
    %1126 = vmatpush1.msra.mxu0 %v676
    %1127 = vmatprep.subr.mxu0 0.0
    %1128 = vmatpush1.msra.mxu0 %v677
    %1129 = vmatprep.subr.mxu0 0.0
    %1130 = vmatpush1.msra.mxu0 %v678
    %1131 = vmatprep.subr.mxu0 0.0
    %1132 = vmatpush1.msra.mxu0 %v679
    %1133 = vmatprep.subr.mxu0 0.0
    %1134 = vmatpush1.msra.mxu0 %v680
    %1135 = vmatprep.subr.mxu0 0.0
    %1136 = vmatpush1.msra.mxu0 %v681
    %1137 = vmatprep.subr.mxu0 0.0
    %1138 = vmatpush1.msra.mxu0 %v682
    %1139 = vmatprep.subr.mxu0 0.0
    %1140 = vmatpush1.msra.mxu0 %v683
    %1141 = vmatprep.subr.mxu0 0.0
    %1142 = vmatpush1.msra.mxu0 %v684
    %1143 = vmatprep.subr.mxu0 0.0
    %1144 = vmatpush1.msra.mxu0 %v685
    %1145 = vmatprep.subr.mxu0 0.0
    %1146 = vmatpush1.msra.mxu0 %v686
    %1147 = vmatprep.subr.mxu0 0.0
    %1148 = vmatpush1.msra.mxu0 %v687
    %1149 = vmatprep.subr.mxu0 0.0
    %1150 = vmatpush1.msra.mxu0 %v688
    %1151 = vmatprep.subr.mxu0 0.0
    %1152 = vmatpush1.msra.mxu0 %v689
    %1153 = vmatprep.subr.mxu0 0.0
    %1154 = vmatpush1.msra.mxu0 %v690
    %1155 = vmatprep.subr.mxu0 0.0
    %1156 = vmatpush1.msra.mxu0 0.0
    %1157 = vmatprep.subr.mxu0 0.0
    %1158 = vmatpush1.msra.mxu0 0.0
    %1159 = vmatprep.subr.mxu0 0.0
    %1160 = vmatpush1.msra.mxu0 0.0
    %1161 = vmatprep.subr.mxu0 0.0
    %1162 = vmatpush1.msra.mxu0 0.0
    %1163 = vmatprep.subr.mxu0 0.0
    %1164 = vmatpush1.msra.mxu0 0.0
    %1165 = vmatprep.subr.mxu0 0.0
    %1166 = vmatpush1.msra.mxu0 0.0
    %1167 = vmatprep.subr.mxu0 0.0
    %1168 = vmatpush1.msra.mxu0 0.0
    %1169 = vmatprep.subr.mxu0 0.0
    %1170 = vmatpush1.msra.mxu0 0.0
    %1171 = vmatprep.subr.mxu0 0.0
    %1172 = vmatpush1.msra.mxu0 0.0
    %1173 = vmatprep.subr.mxu0 0.0
    %1174 = vmatpush1.msra.mxu0 0.0
    %1175 = vmatprep.subr.mxu0 0.0
    %1176 = vmatpush1.msra.mxu0 0.0
    %1177 = vmatprep.subr.mxu0 0.0
    %1178 = vmatpush1.msra.mxu0 0.0
    %1179 = vmatprep.subr.mxu0 0.0
    %1180 = vmatpush1.msra.mxu0 0.0
    %1181 = vmatprep.subr.mxu0 0.0
    %1182 = vmatpush1.msra.mxu0 0.0
    %1183 = vmatprep.subr.mxu0 0.0
    %1184 = vmatpush1.msra.mxu0 0.0
    %1185 = vmatprep.subr.mxu0 0.0
    %1186 = vmatpush1.msra.mxu0 0.0
    %1187 = vmatprep.mubr.f32.mxu0 0.0
    %1188 = vmatmul.mubr.f32.gmra.mrb[0].mxu0 %v1122
    %v1189 = vpop.f32.mrb[0].mxu0
    %v1190 = vadd.f32 0.0, %v1189
    %v1191 = vpop.f32.mrb[0].mxu0
    %1192 = vdwg.mxu0
    %v1193 = vadd.f32 %v667, %v1190
    %v1194 = vtanh.pop %v1193
    %1195 = vmatprep.subr.mxu0 0.0
    %1196 = vmatpush1.msra.mxu0 %v675
    %1197 = vmatprep.subr.mxu0 0.0
    %1198 = vmatpush1.msra.mxu0 %v676
    %1199 = vmatprep.subr.mxu0 0.0
    %1200 = vmatpush1.msra.mxu0 %v677
    %1201 = vmatprep.subr.mxu0 0.0
    %1202 = vmatpush1.msra.mxu0 %v678
    %1203 = vmatprep.subr.mxu0 0.0
    %1204 = vmatpush1.msra.mxu0 %v679
    %1205 = vmatprep.subr.mxu0 0.0
    %1206 = vmatpush1.msra.mxu0 %v680
    %1207 = vmatprep.subr.mxu0 0.0
    %1208 = vmatpush1.msra.mxu0 %v681
    %1209 = vmatprep.subr.mxu0 0.0
    %1210 = vmatpush1.msra.mxu0 %v682
    %1211 = vmatprep.subr.mxu0 0.0
    %1212 = vmatpush1.msra.mxu0 %v683
    %1213 = vmatprep.subr.mxu0 0.0
    %1214 = vmatpush1.msra.mxu0 %v684
    %1215 = vmatprep.subr.mxu0 0.0
    %1216 = vmatpush1.msra.mxu0 %v685
    %1217 = vmatprep.subr.mxu0 0.0
    %1218 = vmatpush1.msra.mxu0 %v686
    %1219 = vmatprep.subr.mxu0 0.0
    %1220 = vmatpush1.msra.mxu0 %v687
    %1221 = vmatprep.subr.mxu0 0.0
    %1222 = vmatpush1.msra.mxu0 %v688
    %1223 = vmatprep.subr.mxu0 0.0
    %1224 = vmatpush1.msra.mxu0 %v689
    %1225 = vmatprep.subr.mxu0 0.0
    %1226 = vmatpush1.msra.mxu0 %v690
    %1227 = vmatprep.subr.mxu0 0.0
    %1228 = vmatpush1.msra.mxu0 0.0
    %1229 = vmatprep.subr.mxu0 0.0
    %1230 = vmatpush1.msra.mxu0 0.0
    %1231 = vmatprep.subr.mxu0 0.0
    %1232 = vmatpush1.msra.mxu0 0.0
    %1233 = vmatprep.subr.mxu0 0.0
    %1234 = vmatpush1.msra.mxu0 0.0
    %1235 = vmatprep.subr.mxu0 0.0
    %1236 = vmatpush1.msra.mxu0 0.0
    %1237 = vmatprep.subr.mxu0 0.0
    %1238 = vmatpush1.msra.mxu0 0.0
    %1239 = vmatprep.subr.mxu0 0.0
    %1240 = vmatpush1.msra.mxu0 0.0
    %1241 = vmatprep.subr.mxu0 0.0
    %1242 = vmatpush1.msra.mxu0 0.0
    %1243 = vmatprep.subr.mxu0 0.0
    %1244 = vmatpush1.msra.mxu0 0.0
    %1245 = vmatprep.subr.mxu0 0.0
    %1246 = vmatpush1.msra.mxu0 0.0
    %1247 = vmatprep.subr.mxu0 0.0
    %1248 = vmatpush1.msra.mxu0 0.0
    %1249 = vmatprep.subr.mxu0 0.0
    %1250 = vmatpush1.msra.mxu0 0.0
    %1251 = vmatprep.subr.mxu0 0.0
    %1252 = vmatpush1.msra.mxu0 0.0
    %1253 = vmatprep.subr.mxu0 0.0
    %1254 = vmatpush1.msra.mxu0 0.0
    %1255 = vmatprep.subr.mxu0 0.0
    %1256 = vmatpush1.msra.mxu0 0.0
    %1257 = vmatprep.subr.mxu0 0.0
    %1258 = vmatpush1.msra.mxu0 0.0
    %1259 = vmatprep.mubr.f32.mxu0 0.0
    %1260 = vmatmul.mubr.f32.gmra.mrb[0].mxu0 %v1194
    %v1261 = vpop.f32.mrb[0].mxu0
    %v1262 = vadd.f32 0.0, %v1261
    %v1263 = vpop.f32.mrb[0].mxu0
    %1264 = vdwg.mxu0
    %v1265 = vadd.f32 %v672, %v1262
    %v1266 = vtanh.pop %v1265
    %v1267 = vld [vmem:[#allocation7] sm:$0xff]
    %v1268 = vld [vmem:[#allocation7 + $0x8] sm:$0xff]
    %v1269 = vld [vmem:[#allocation7 + $0x10] sm:$0xff]
    %v1270 = vld [vmem:[#allocation7 + $0x18] sm:$0xff]
    %v1271 = vld [vmem:[#allocation7 + $0x20] sm:$0xff]
    %v1272 = vld [vmem:[#allocation7 + $0x28] sm:$0xff]
    %v1273 = vld [vmem:[#allocation7 + $0x30] sm:$0xff]
    %v1274 = vld [vmem:[#allocation7 + $0x38] sm:$0xff]
    %v1275 = vld [vmem:[#allocation7 + $0x40] sm:$0xff]
    %v1276 = vld [vmem:[#allocation7 + $0x48] sm:$0xff]
    %v1277 = vld [vmem:[#allocation7 + $0x50] sm:$0xff]
    %v1278 = vld [vmem:[#allocation7 + $0x58] sm:$0xff]
    %v1279 = vld [vmem:[#allocation7 + $0x60] sm:$0xff]
    %v1280 = vld [vmem:[#allocation7 + $0x68] sm:$0xff]
    %v1281 = vld [vmem:[#allocation7 + $0x70] sm:$0xff]
    %v1282 = vld [vmem:[#allocation7 + $0x78] sm:$0xff]
    %1283 = vmatprep.subr.mxu0 0.0
    %1284 = vmatpush1.msra.mxu0 %v1267
    %1285 = vmatprep.subr.mxu0 0.0
    %1286 = vmatpush1.msra.mxu0 %v1268
    %1287 = vmatprep.subr.mxu0 0.0
    %1288 = vmatpush1.msra.mxu0 %v1269
    %1289 = vmatprep.subr.mxu0 0.0
    %1290 = vmatpush1.msra.mxu0 %v1270
    %1291 = vmatprep.subr.mxu0 0.0
    %1292 = vmatpush1.msra.mxu0 %v1271
    %1293 = vmatprep.subr.mxu0 0.0
    %1294 = vmatpush1.msra.mxu0 %v1272
    %1295 = vmatprep.subr.mxu0 0.0
    %1296 = vmatpush1.msra.mxu0 %v1273
    %1297 = vmatprep.subr.mxu0 0.0
    %1298 = vmatpush1.msra.mxu0 %v1274
    %1299 = vmatprep.subr.mxu0 0.0
    %1300 = vmatpush1.msra.mxu0 %v1275
    %1301 = vmatprep.subr.mxu0 0.0
    %1302 = vmatpush1.msra.mxu0 %v1276
    %1303 = vmatprep.subr.mxu0 0.0
    %1304 = vmatpush1.msra.mxu0 %v1277
    %1305 = vmatprep.subr.mxu0 0.0
    %1306 = vmatpush1.msra.mxu0 %v1278
    %1307 = vmatprep.subr.mxu0 0.0
    %1308 = vmatpush1.msra.mxu0 %v1279
    %1309 = vmatprep.subr.mxu0 0.0
    %1310 = vmatpush1.msra.mxu0 %v1280
    %1311 = vmatprep.subr.mxu0 0.0
    %1312 = vmatpush1.msra.mxu0 %v1281
    %1313 = vmatprep.subr.mxu0 0.0
    %1314 = vmatpush1.msra.mxu0 %v1282
    %1315 = vmatprep.subr.mxu0 0.0
    %1316 = vmatpush1.msra.mxu0 0.0
    %1317 = vmatprep.subr.mxu0 0.0
    %1318 = vmatpush1.msra.mxu0 0.0
    %1319 = vmatprep.subr.mxu0 0.0
    %1320 = vmatpush1.msra.mxu0 0.0
    %1321 = vmatprep.subr.mxu0 0.0
    %1322 = vmatpush1.msra.mxu0 0.0
    %1323 = vmatprep.subr.mxu0 0.0
    %1324 = vmatpush1.msra.mxu0 0.0
    %1325 = vmatprep.subr.mxu0 0.0
    %1326 = vmatpush1.msra.mxu0 0.0
    %1327 = vmatprep.subr.mxu0 0.0
    %1328 = vmatpush1.msra.mxu0 0.0
    %1329 = vmatprep.subr.mxu0 0.0
    %1330 = vmatpush1.msra.mxu0 0.0
    %1331 = vmatprep.subr.mxu0 0.0
    %1332 = vmatpush1.msra.mxu0 0.0
    %1333 = vmatprep.subr.mxu0 0.0
    %1334 = vmatpush1.msra.mxu0 0.0
    %1335 = vmatprep.subr.mxu0 0.0
    %1336 = vmatpush1.msra.mxu0 0.0
    %1337 = vmatprep.subr.mxu0 0.0
    %1338 = vmatpush1.msra.mxu0 0.0
    %1339 = vmatprep.subr.mxu0 0.0
    %1340 = vmatpush1.msra.mxu0 0.0
    %1341 = vmatprep.subr.mxu0 0.0
    %1342 = vmatpush1.msra.mxu0 0.0
    %1343 = vmatprep.subr.mxu0 0.0
    %1344 = vmatpush1.msra.mxu0 0.0
    %1345 = vmatprep.subr.mxu0 0.0
    %1346 = vmatpush1.msra.mxu0 0.0
    %1347 = vmatprep.mubr.f32.mxu0 0.0
    %1348 = vmatmul.mubr.f32.gmra.mrb[0].mxu0 %v762
    %v1349 = vpop.f32.mrb[0].mxu0
    %v1350 = vadd.f32 0.0, %v1349
    %v1351 = vpop.f32.mrb[0].mxu0
    %1352 = vmatprep.mubr.f32.mxu0 0.0
    %1353 = vmatmul.mubr.f32.gmra.mrb[0].mxu0 %v834
    %v1354 = vpop.f32.mrb[0].mxu0
    %v1355 = vadd.f32 0.0, %v1354
    %v1356 = vpop.f32.mrb[0].mxu0
    %1357 = vmatprep.mubr.f32.mxu0 0.0
    %1358 = vmatmul.mubr.f32.gmra.mrb[0].mxu0 %v906
    %v1359 = vpop.f32.mrb[0].mxu0
    %v1360 = vadd.f32 0.0, %v1359
    %v1361 = vpop.f32.mrb[0].mxu0
    %1362 = vmatprep.mubr.f32.mxu0 0.0
    %1363 = vmatmul.mubr.f32.gmra.mrb[0].mxu0 %v978
    %v1364 = vpop.f32.mrb[0].mxu0
    %v1365 = vadd.f32 0.0, %v1364
    %v1366 = vpop.f32.mrb[0].mxu0
    %1367 = vmatprep.mubr.f32.mxu0 0.0
    %1368 = vmatmul.mubr.f32.gmra.mrb[0].mxu0 %v1050
    %v1369 = vpop.f32.mrb[0].mxu0
    %v1370 = vadd.f32 0.0, %v1369
    %v1371 = vpop.f32.mrb[0].mxu0
    %1372 = vmatprep.mubr.f32.mxu0 0.0
    %1373 = vmatmul.mubr.f32.gmra.mrb[0].mxu0 %v1122
    %v1374 = vpop.f32.mrb[0].mxu0
    %v1375 = vadd.f32 0.0, %v1374
    %v1376 = vpop.f32.mrb[0].mxu0
    %1377 = vmatprep.mubr.f32.mxu0 0.0
    %1378 = vmatmul.mubr.f32.gmra.mrb[0].mxu0 %v1194
    %v1379 = vpop.f32.mrb[0].mxu0
    %v1380 = vadd.f32 0.0, %v1379
    %v1381 = vpop.f32.mrb[0].mxu0
    %1382 = vmatprep.mubr.f32.mxu0 0.0
    %1383 = vmatmul.mubr.f32.gmra.mrb[0].mxu0 %v1266
    %v1384 = vpop.f32.mrb[0].mxu0
    %v1385 = vadd.f32 0.0, %v1384
    %v1386 = vpop.f32.mrb[0].mxu0
    %1387 = vdwg.mxu0
    %v1388 = vtanh.pop %v1350
    %v1389 = vtanh.pop %v1355
    %v1390 = vtanh.pop %v1360
    %v1391 = vtanh.pop %v1365
    %v1392 = vtanh.pop %v1370
    %v1393 = vtanh.pop %v1375
    %v1394 = vtanh.pop %v1380
    %v1395 = vtanh.pop %v1385
    %1396 = vst [vmem:[#allocation8] sm:$0xff] %v1388
    %1397 = vst [vmem:[#allocation8 + $0x8] sm:$0xff] %v1389
    %1398 = vst [vmem:[#allocation8 + $0x10] sm:$0xff] %v1390
    %1399 = vst [vmem:[#allocation8 + $0x18] sm:$0xff] %v1391
    %1400 = vst [vmem:[#allocation8 + $0x20] sm:$0xff] %v1392
    %1401 = vst [vmem:[#allocation8 + $0x28] sm:$0xff] %v1393
    %1402 = vst [vmem:[#allocation8 + $0x30] sm:$0xff] %v1394
    %1403 = vst [vmem:[#allocation8 + $0x38] sm:$0xff] %v1395
    // Predicated region
    $region38: #{tpu_custom_call.1} parent=1 // pred_check
      _
    $region39: #{tpu_custom_call.1} parent=1 // pred_check_branch
      %1405 = sbr.rel (0) target = $region41
    $region40: #{tpu_custom_call.1} parent=1 // pred_region
      %s1407 = ssub.s32 1024, 1024
      %1408 = vsyncadd [#allocation4], %s1407
      %s1409 = sshll.u32 [#allocation8], 4
      %s1410 = int_to_ptr.vmem [resolvable:$true] %s1409
      %1415 = dma.vmem_to_hbm [thread:$0]  %s1410, 1024, %s6, [#allocation4], 128, 128, 8
    $region41: #{tpu_custom_call.1} parent=1 // pred_fallthru
      _
    // Predicated region
    $region42: #{tpu_custom_call.1} parent=1 // pred_check
      _
    $region43: #{tpu_custom_call.1} parent=1 // pred_check_branch
      %1417 = sbr.rel (0) target = $region45
    $region44: #{tpu_custom_call.1} parent=1 // pred_region
      %1418 = dma.done [#allocation4], 1024
    $region45: #{tpu_custom_call.1} parent=1 // pred_fallthru
      _
    %1419 = vsyncpa [#allocation3], 1
    %1420 = vsyncpa [#allocation6], 1
    %1421 = vsyncpa [#allocation4], 1

</llo_original>
